<compile_context>
chip_gen: v7x
topology: tpu7x:2x2x1
jax: 0.10.0
libtpu: 0.0.40
codegen_flags: <defaults>
</compile_context>

<pallas_src>
import math
import numpy as np
import jax
import jax.numpy as jnp
from jax.experimental import pallas as pl
from jax.experimental.pallas import tpu as pltpu

DT = 0.1
DELTA = math.pi / 3.0
SIN_DELTA = math.sin(DELTA)
COS_DELTA = math.cos(DELTA)
EPSILON = 0.01
HIDDEN = 32
DEFAULT_TB = 4096   # samples per grid step; must be a multiple of 1024
                    # (8 sublanes x multiple-of-128 lanes per tile)


def loss_nn_kernel(scal_ref, w_ref, x_ref, o_ref):
    # scal_ref: SMEM (8,)               = [r, P_norm, k_atp, P00, P01+P10, P11, b2, bh2]
    # w_ref:    VMEM (3, HIDDEN, 8, 4)  fused MLP weights; segments 0:V(x) 1:V(f(x)) 2:h(x);
    #                                   last dim = [w_x1, w_x2, b1, w2]; pre-broadcast on sublanes
    # x_ref:    VMEM (2, 8, L)          x1/x2 on leading axis, batch dense on (sublane, lane)
    # o_ref:    VMEM (8, 8, L)          8 output features, batch dense on (sublane, lane)
    x1 = x_ref[0]                        # (8, L)
    x2 = x_ref[1]                        # (8, L)

    # ---- dynamics.forward (t shared by sin here and cos in quad_norm) ----
    t = x1 + DELTA
    new_x1 = x1 + DT * x2
    new_x2 = x2 + DT * (-0.5 * x2 - (jnp.sin(t) - SIN_DELTA))

    # ---- fused 3 x (2 -> HIDDEN -> 1, tanh) MLPs: one tanh stream, no MXU ----
    W = w_ref[...]                       # (3, HIDDEN, 8, 4)
    c1 = W[:, :, :, 0:1]                 # (3, HIDDEN, 8, 1)
    c2 = W[:, :, :, 1:2]
    cb = W[:, :, :, 2:3]
    cw2 = W[:, :, :, 3:4]

    z1 = jnp.stack([x1, new_x1, x1], axis=0)[:, None, :, :]    # (3, 1, 8, L)
    z2 = jnp.stack([x2, new_x2, x2], axis=0)[:, None, :, :]

    hid = jnp.tanh(c1 * z1 + c2 * z2 + cb)                     # (3, HIDDEN, 8, L)
    seg = jnp.sum(cw2 * hid, axis=1)                           # (3, 8, L)

    b2 = scal_ref[6]
    bh2 = scal_ref[7]
    V_x = seg[0] + b2                    # lyapunov(x)
    V_diff = seg[1] - seg[0]             # lyapunov(f(x)) - lyapunov(x)  (b2 cancels)
    h_x = seg[2] + bh2                   # h(x)

    # ---- quadratic lyapunov: V_q(z) = z^T P z, expanded ----
    p00 = scal_ref[3]
    p01s = scal_ref[4]
    p11 = scal_ref[5]
    V_qx = p00 * x1 * x1 + p01s * x1 * x2 + p11 * x2 * x2
    V_qfx = p00 * new_x1 * new_x1 + p01s * new_x1 * new_x2 + p11 * new_x2 * new_x2

    # ---- quad_norm.forward ----
    # Dh = Df(x) - Df(0) = [[0, 0], [c, 0]] with c = -dt*(cos(x1+delta)-cos(delta)),
    # so ||Dh||_F^2 = c^2 and ||ATP@Dh||_F^2 = (ATP[0,1]^2 + ATP[1,1]^2) * c^2 (exact).
    # k_atp = 2*sqrt(ATP[0,1]^2 + ATP[1,1]^2) is precomputed in the wrapper.
    r = scal_ref[0]
    p_norm = scal_ref[1]
    k_atp = scal_ref[2]
    c = -DT * (jnp.cos(t) - COS_DELTA)
    qn = r - (k_atp * jnp.abs(c) + p_norm * (c * c))

    # single unmasked, lane-dense full-block store
    o_ref[...] = jnp.stack(
        [V_diff, V_x, h_x, V_qx, V_qfx - V_qx, qn, new_x1, new_x2], axis=0)


def loss_nn_forward(x, params, tb=DEFAULT_TB):
    assert tb % 1024 == 0, "batch tile must be a multiple of 1024 (8x128 layout)"
    L = tb // 8
    B = x.shape[0]
    Bp = ((B + tb - 1) // tb) * tb
    G = Bp // tb

    # fused, sublane-pre-broadcast weight pack: (3, HIDDEN, 8, 4)
    w1, b1, w2 = params["w1"], params["b1"], params["w2"]
    wh1, bh1, wh2 = params["wh1"], params["bh1"], params["wh2"]
    cols = jnp.stack([
        jnp.stack([w1[0], w1[1], b1[0], w2[:, 0]], axis=-1),      # segment: V(x)
        jnp.stack([w1[0], w1[1], b1[0], w2[:, 0]], axis=-1),      # segment: V(f(x))
        jnp.stack([wh1[0], wh1[1], bh1[0], wh2[:, 0]], axis=-1),  # segment: h(x)
    ], axis=0).astype(jnp.float32)                                # (3, HIDDEN, 4)
    wpack = jnp.broadcast_to(cols[:, :, None, :], (3, HIDDEN, 8, 4))

    # all tiny constants in one SMEM scalar operand
    atp = params["ATP"]
    k_atp = 2.0 * jnp.sqrt(atp[0, 1] ** 2 + atp[1, 1] ** 2)
    P = params["P"]
    scalars = jnp.stack([
        params["rp"][0, 0], params["rp"][0, 1], k_atp,
        P[0, 0], P[0, 1] + P[1, 0], P[1, 1],
        params["b2"][0, 0], params["bh2"][0, 0],
    ]).astype(jnp.float32)                                        # (8,)

    # TODO(synk): if callers can provide x as (2, B) and consume (8, B) directly,
    # drop these transposes/reshapes - they cost ~2x the kernel's own HBM traffic.
    x_t = jnp.transpose(x).astype(jnp.float32)                    # (2, B)
    if Bp != B:
        x_t = jnp.pad(x_t, ((0, 0), (0, Bp - B)))
    x_t = x_t.reshape(2, 8 * G, L)                                # batch dense on (8, L)

    out_t = pl.pallas_call(
        loss_nn_kernel,
        out_shape=jax.ShapeDtypeStruct((8, 8 * G, L), jnp.float32),
        grid=(G,),
        in_specs=[
            pl.BlockSpec(memory_space=pltpu.MemorySpace.SMEM),        # scalars
            pl.BlockSpec((3, HIDDEN, 8, 4), lambda i: (0, 0, 0, 0)),  # packed weights
            pl.BlockSpec((2, 8, L), lambda i: (0, i, 0)),             # x
        ],
        out_specs=pl.BlockSpec((8, 8, L), lambda i: (0, i, 0)),
        compiler_params=pltpu.CompilerParams(
            dimension_semantics=("parallel",),
            vmem_limit_bytes=32 * 1024 * 1024),
    )(scalars, wpack, x_t)

    out = out_t.reshape(8, Bp)[:, :B]
    return jnp.transpose(out)                                     # (B, 8)


# ---------------- pure-JAX reference (mirrors the PyTorch modules) -----------
def ref_forward(x, params):
    x1 = x[:, 0:1]; x2 = x[:, 1:2]
    new_x1 = x1 + DT * x2
    new_x2 = x2 + DT * (-0.5 * x2 - (jnp.sin(x1 + DELTA) - SIN_DELTA))
    new_x = jnp.concatenate([new_x1, new_x2], axis=1)

    def mlp(z, w1, b1, w2, b2):
        return jnp.tanh(z @ w1 + b1) @ w2 + b2

    V_x = mlp(x, params["w1"], params["b1"], params["w2"], params["b2"])
    V_fx = mlp(new_x, params["w1"], params["b1"], params["w2"], params["b2"])
    h_x = mlp(x, params["wh1"], params["bh1"], params["wh2"], params["bh2"])
    V_qx = jnp.sum((x @ params["P"]) * x, axis=1, keepdims=True)
    V_qfx = jnp.sum((new_x @ params["P"]) * new_x, axis=1, keepdims=True)

    # quad_norm via explicit per-sample Jacobians (as in the torch code)
    x1f = x[:, 0]
    row0 = jnp.stack([jnp.zeros_like(x1f), jnp.ones_like(x1f)], axis=1)
    row1 = jnp.stack([-jnp.cos(x1f + DELTA), -0.5 * jnp.ones_like(x1f)], axis=1)
    Amat = jnp.stack([row0, row1], axis=1)                        # (B,2,2)
    F = jnp.eye(2, dtype=x.dtype)[None] + DT * Amat
    Dh = F - params["A0"][None]
    ATPDh = jnp.einsum("ij,bjk->bik", params["ATP"], Dh)
    ATPDh_norm_sq = jnp.sum(ATPDh ** 2, axis=(1, 2))
    Dh_norm_sq = jnp.sum(Dh ** 2, axis=(1, 2))
    quad_term = 2.0 * jnp.sqrt(ATPDh_norm_sq) + params["rp"][0, 1] * Dh_norm_sq
    qn = (params["rp"][0, 0] - quad_term)[:, None]

    return jnp.concatenate(
        [V_fx - V_x, V_x, h_x, V_qx, V_qfx - V_qx, qn, new_x1, new_x2], axis=1)


def make_params():
    key = jax.random.PRNGKey(0)
    ks = jax.random.split(key, 9)
    p = {
        "w1":  0.5 * jax.random.normal(ks[0], (2, HIDDEN), jnp.float32),
        "b1":  0.1 * jax.random.normal(ks[1], (1, HIDDEN), jnp.float32),
        "w2":  0.5 * jax.random.normal(ks[2], (HIDDEN, 1), jnp.float32),
        "b2":  0.1 * jax.random.normal(ks[3], (1, 1), jnp.float32),
        "wh1": 0.5 * jax.random.normal(ks[4], (2, HIDDEN), jnp.float32),
        "bh1": 0.1 * jax.random.normal(ks[5], (1, HIDDEN), jnp.float32),
        "wh2": 0.5 * jax.random.normal(ks[6], (HIDDEN, 1), jnp.float32),
        "bh2": 0.1 * jax.random.normal(ks[7], (1, 1), jnp.float32),
    }
    # P buffer (SPD, deterministic), A = I + dt * Jacobian(0), ATP = A^T P
    P_np = np.array([[2.0, 0.5], [0.5, 1.5]], np.float64)
    A_np = np.array([[1.0, DT], [-DT * COS_DELTA, 1.0 - 0.5 * DT]], np.float64)
    ATP_np = A_np.T @ P_np
    Q = A_np.T @ P_np @ A_np - P_np
    r = np.max(np.abs(np.linalg.eigvals(Q))) - EPSILON   # init-time host scalar
    P_norm = np.linalg.norm(P_np, ord=2)
    p["P"] = jnp.asarray(P_np, jnp.float32)
    p["A0"] = jnp.asarray(A_np, jnp.float32)
    p["ATP"] = jnp.asarray(ATP_np, jnp.float32)
    p["rp"] = jnp.asarray(np.array([[r, P_norm]]), jnp.float32)   # (1, 2)
    return p, ks[8]


if __name__ == "__main__":
    params, kx = make_params()

    # small batch (exercises padding; single grid step at minimum tile)
    B = 300
    x = jax.random.normal(kx, (B, 2), jnp.float32)
    ref = ref_forward(x, params)
    out = jax.block_until_ready(loss_nn_forward(x, params, tb=1024))
    assert out.shape == (B, 8)
    np.testing.assert_allclose(np.asarray(out), np.asarray(ref),
                               rtol=1e-4, atol=1e-5)

    # multi-grid-step path + default large-tile path
    B2 = 2500
    x2 = jax.random.normal(jax.random.PRNGKey(1), (B2, 2), jnp.float32)
    ref2 = ref_forward(x2, params)
    out2 = jax.block_until_ready(loss_nn_forward(x2, params, tb=1024))   # 3 grid steps
    np.testing.assert_allclose(np.asarray(out2), np.asarray(ref2),
                               rtol=1e-4, atol=1e-5)
    out3 = jax.block_until_ready(loss_nn_forward(x2, params))            # default tb=4096
    np.testing.assert_allclose(np.asarray(out3), np.asarray(ref2),
                               rtol=1e-4, atol=1e-5)

    print("KERNEL_OK")
</pallas_src>

<mosaic_0001>
module attributes {stable_mosaic.version = 11 : i64} {
  func.func @loss_nn_kernel(%arg0: i32, %arg1: memref<8xf32, #tpu.memory_space<smem>>, %arg2: memref<3x32x8x4xf32, #tpu.memory_space<vmem>>, %arg3: memref<2x8x128xf32, #tpu.memory_space<vmem>>, %arg4: memref<8x8x128xf32, #tpu.memory_space<vmem>>) attributes {dimension_semantics = [#tpu.dimension_semantics<parallel>], iteration_bounds = array<i64: 1>, scalar_prefetch = 0 : i64, scratch_operands = 0 : i64, tpu.core_type = #tpu.core_type<tc>, window_params = [{transform_indices = @transform_0, window_bounds = array<i64: 8>}, {pipeline_mode = #tpu.pipeline_mode<synchronous>, transform_indices = @transform_1, window_bounds = array<i64: 3, 32, 8, 4>}, {transform_indices = @transform_2, window_bounds = array<i64: 2, 8, 128>}, {transform_indices = @transform_3, window_bounds = array<i64: 8, 8, 128>}]} {
    %c0 = arith.constant 0 : index
    %c0_0 = arith.constant 0 : index
    %c0_1 = arith.constant 0 : index
    %0 = vector.load %arg3[%c0, %c0_0, %c0_1] : memref<2x8x128xf32, #tpu.memory_space<vmem>>, vector<1x8x128xf32>
    %1 = vector.shape_cast %0 : vector<1x8x128xf32> to vector<8x128xf32>
    %c1 = arith.constant 1 : index
    %c0_2 = arith.constant 0 : index
    %c0_3 = arith.constant 0 : index
    %2 = vector.load %arg3[%c1, %c0_2, %c0_3] : memref<2x8x128xf32, #tpu.memory_space<vmem>>, vector<1x8x128xf32>
    %3 = vector.shape_cast %2 : vector<1x8x128xf32> to vector<8x128xf32>
    %cst = arith.constant 1.04719758 : f32
    %4 = vector.broadcast %cst : f32 to vector<8x128xf32>
    %5 = arith.addf %1, %4 : vector<8x128xf32>
    %cst_4 = arith.constant 1.000000e-01 : f32
    %6 = vector.broadcast %cst_4 : f32 to vector<8x128xf32>
    %7 = arith.mulf %6, %3 : vector<8x128xf32>
    %8 = arith.addf %1, %7 : vector<8x128xf32>
    %cst_5 = arith.constant -5.000000e-01 : f32
    %9 = vector.broadcast %cst_5 : f32 to vector<8x128xf32>
    %10 = arith.mulf %9, %3 : vector<8x128xf32>
    %11 = math.sin %5 : vector<8x128xf32>
    %cst_6 = arith.constant 0.866025388 : f32
    %12 = vector.broadcast %cst_6 : f32 to vector<8x128xf32>
    %13 = arith.subf %11, %12 : vector<8x128xf32>
    %14 = arith.subf %10, %13 : vector<8x128xf32>
    %cst_7 = arith.constant 1.000000e-01 : f32
    %15 = vector.broadcast %cst_7 : f32 to vector<8x128xf32>
    %16 = arith.mulf %15, %14 : vector<8x128xf32>
    %17 = arith.addf %3, %16 : vector<8x128xf32>
    %c0_8 = arith.constant 0 : index
    %c0_9 = arith.constant 0 : index
    %c0_10 = arith.constant 0 : index
    %c0_11 = arith.constant 0 : index
    %18 = vector.load %arg2[%c0_8, %c0_9, %c0_10, %c0_11] : memref<3x32x8x4xf32, #tpu.memory_space<vmem>>, vector<3x32x8x4xf32>
    %19 = vector.extract_strided_slice %18 {offsets = [0, 0, 0, 0], sizes = [3, 32, 8, 1], strides = [1, 1, 1, 1]} : vector<3x32x8x4xf32> to vector<3x32x8x1xf32>
    %20 = vector.extract_strided_slice %18 {offsets = [0, 0, 0, 1], sizes = [3, 32, 8, 1], strides = [1, 1, 1, 1]} : vector<3x32x8x4xf32> to vector<3x32x8x1xf32>
    %21 = vector.extract_strided_slice %18 {offsets = [0, 0, 0, 2], sizes = [3, 32, 8, 1], strides = [1, 1, 1, 1]} : vector<3x32x8x4xf32> to vector<3x32x8x1xf32>
    %22 = vector.extract_strided_slice %18 {offsets = [0, 0, 0, 3], sizes = [3, 32, 8, 1], strides = [1, 1, 1, 1]} : vector<3x32x8x4xf32> to vector<3x32x8x1xf32>
    %23 = vector.shape_cast %1 : vector<8x128xf32> to vector<1x8x128xf32>
    %24 = vector.shape_cast %8 : vector<8x128xf32> to vector<1x8x128xf32>
    %25 = vector.shape_cast %1 : vector<8x128xf32> to vector<1x8x128xf32>
    %26 = tpu.concatenate %23, %24, %25 in 0 : vector<1x8x128xf32>, vector<1x8x128xf32>, vector<1x8x128xf32> -> vector<3x8x128xf32>
    %27 = vector.shape_cast %26 : vector<3x8x128xf32> to vector<3x1x8x128xf32>
    %28 = vector.shape_cast %3 : vector<8x128xf32> to vector<1x8x128xf32>
    %29 = vector.shape_cast %17 : vector<8x128xf32> to vector<1x8x128xf32>
    %30 = vector.shape_cast %3 : vector<8x128xf32> to vector<1x8x128xf32>
    %31 = tpu.concatenate %28, %29, %30 in 0 : vector<1x8x128xf32>, vector<1x8x128xf32>, vector<1x8x128xf32> -> vector<3x8x128xf32>
    %32 = vector.shape_cast %31 : vector<3x8x128xf32> to vector<3x1x8x128xf32>
    %33 = vector.broadcast %19 : vector<3x32x8x1xf32> to vector<3x32x8x128xf32>
    %34 = vector.broadcast %27 : vector<3x1x8x128xf32> to vector<3x32x8x128xf32>
    %35 = arith.mulf %33, %34 : vector<3x32x8x128xf32>
    %36 = vector.broadcast %20 : vector<3x32x8x1xf32> to vector<3x32x8x128xf32>
    %37 = vector.broadcast %32 : vector<3x1x8x128xf32> to vector<3x32x8x128xf32>
    %38 = arith.mulf %36, %37 : vector<3x32x8x128xf32>
    %39 = arith.addf %35, %38 : vector<3x32x8x128xf32>
    %40 = vector.broadcast %21 : vector<3x32x8x1xf32> to vector<3x32x8x128xf32>
    %41 = arith.addf %39, %40 : vector<3x32x8x128xf32>
    %42 = math.tanh %41 : vector<3x32x8x128xf32>
    %43 = vector.broadcast %22 : vector<3x32x8x1xf32> to vector<3x32x8x128xf32>
    %44 = arith.mulf %43, %42 : vector<3x32x8x128xf32>
    %cst_12 = arith.constant dense<0.000000e+00> : vector<3x8x128xf32>
    %45 = vector.multi_reduction <add>, %44, %cst_12 [1] : vector<3x32x8x128xf32> to vector<3x8x128xf32>
    %c6 = arith.constant 6 : index
    %46 = memref.load %arg1[%c6] : memref<8xf32, #tpu.memory_space<smem>>
    %c7 = arith.constant 7 : index
    %47 = memref.load %arg1[%c7] : memref<8xf32, #tpu.memory_space<smem>>
    %48 = vector.extract_strided_slice %45 {offsets = [0, 0, 0], sizes = [1, 8, 128], strides = [1, 1, 1]} : vector<3x8x128xf32> to vector<1x8x128xf32>
    %49 = vector.shape_cast %48 : vector<1x8x128xf32> to vector<8x128xf32>
    %50 = vector.broadcast %46 : f32 to vector<8x128xf32>
    %51 = arith.addf %49, %50 : vector<8x128xf32>
    %52 = vector.extract_strided_slice %45 {offsets = [1, 0, 0], sizes = [1, 8, 128], strides = [1, 1, 1]} : vector<3x8x128xf32> to vector<1x8x128xf32>
    %53 = vector.shape_cast %52 : vector<1x8x128xf32> to vector<8x128xf32>
    %54 = vector.extract_strided_slice %45 {offsets = [0, 0, 0], sizes = [1, 8, 128], strides = [1, 1, 1]} : vector<3x8x128xf32> to vector<1x8x128xf32>
    %55 = vector.shape_cast %54 : vector<1x8x128xf32> to vector<8x128xf32>
    %56 = arith.subf %53, %55 : vector<8x128xf32>
    %57 = vector.extract_strided_slice %45 {offsets = [2, 0, 0], sizes = [1, 8, 128], strides = [1, 1, 1]} : vector<3x8x128xf32> to vector<1x8x128xf32>
    %58 = vector.shape_cast %57 : vector<1x8x128xf32> to vector<8x128xf32>
    %59 = vector.broadcast %47 : f32 to vector<8x128xf32>
    %60 = arith.addf %58, %59 : vector<8x128xf32>
    %c3 = arith.constant 3 : index
    %61 = memref.load %arg1[%c3] : memref<8xf32, #tpu.memory_space<smem>>
    %c4 = arith.constant 4 : index
    %62 = memref.load %arg1[%c4] : memref<8xf32, #tpu.memory_space<smem>>
    %c5 = arith.constant 5 : index
    %63 = memref.load %arg1[%c5] : memref<8xf32, #tpu.memory_space<smem>>
    %64 = vector.broadcast %61 : f32 to vector<8x128xf32>
    %65 = arith.mulf %64, %1 : vector<8x128xf32>
    %66 = arith.mulf %65, %1 : vector<8x128xf32>
    %67 = vector.broadcast %62 : f32 to vector<8x128xf32>
    %68 = arith.mulf %67, %1 : vector<8x128xf32>
    %69 = arith.mulf %68, %3 : vector<8x128xf32>
    %70 = arith.addf %66, %69 : vector<8x128xf32>
    %71 = vector.broadcast %63 : f32 to vector<8x128xf32>
    %72 = arith.mulf %71, %3 : vector<8x128xf32>
    %73 = arith.mulf %72, %3 : vector<8x128xf32>
    %74 = arith.addf %70, %73 : vector<8x128xf32>
    %75 = vector.broadcast %61 : f32 to vector<8x128xf32>
    %76 = arith.mulf %75, %8 : vector<8x128xf32>
    %77 = arith.mulf %76, %8 : vector<8x128xf32>
    %78 = vector.broadcast %62 : f32 to vector<8x128xf32>
    %79 = arith.mulf %78, %8 : vector<8x128xf32>
    %80 = arith.mulf %79, %17 : vector<8x128xf32>
    %81 = arith.addf %77, %80 : vector<8x128xf32>
    %82 = vector.broadcast %63 : f32 to vector<8x128xf32>
    %83 = arith.mulf %82, %17 : vector<8x128xf32>
    %84 = arith.mulf %83, %17 : vector<8x128xf32>
    %85 = arith.addf %81, %84 : vector<8x128xf32>
    %c0_13 = arith.constant 0 : index
    %86 = memref.load %arg1[%c0_13] : memref<8xf32, #tpu.memory_space<smem>>
    %c1_14 = arith.constant 1 : index
    %87 = memref.load %arg1[%c1_14] : memref<8xf32, #tpu.memory_space<smem>>
    %c2 = arith.constant 2 : index
    %88 = memref.load %arg1[%c2] : memref<8xf32, #tpu.memory_space<smem>>
    %89 = math.cos %5 : vector<8x128xf32>
    %cst_15 = arith.constant 5.000000e-01 : f32
    %90 = vector.broadcast %cst_15 : f32 to vector<8x128xf32>
    %91 = arith.subf %89, %90 : vector<8x128xf32>
    %cst_16 = arith.constant -1.000000e-01 : f32
    %92 = vector.broadcast %cst_16 : f32 to vector<8x128xf32>
    %93 = arith.mulf %92, %91 : vector<8x128xf32>
    %94 = math.absf %93 : vector<8x128xf32>
    %95 = vector.broadcast %88 : f32 to vector<8x128xf32>
    %96 = arith.mulf %95, %94 : vector<8x128xf32>
    %97 = arith.mulf %93, %93 : vector<8x128xf32>
    %98 = vector.broadcast %87 : f32 to vector<8x128xf32>
    %99 = arith.mulf %98, %97 : vector<8x128xf32>
    %100 = arith.addf %96, %99 : vector<8x128xf32>
    %101 = vector.broadcast %86 : f32 to vector<8x128xf32>
    %102 = arith.subf %101, %100 : vector<8x128xf32>
    %103 = arith.subf %85, %74 : vector<8x128xf32>
    %104 = vector.shape_cast %56 : vector<8x128xf32> to vector<1x8x128xf32>
    %105 = vector.shape_cast %51 : vector<8x128xf32> to vector<1x8x128xf32>
    %106 = vector.shape_cast %60 : vector<8x128xf32> to vector<1x8x128xf32>
    %107 = vector.shape_cast %74 : vector<8x128xf32> to vector<1x8x128xf32>
    %108 = vector.shape_cast %103 : vector<8x128xf32> to vector<1x8x128xf32>
    %109 = vector.shape_cast %102 : vector<8x128xf32> to vector<1x8x128xf32>
    %110 = vector.shape_cast %8 : vector<8x128xf32> to vector<1x8x128xf32>
    %111 = vector.shape_cast %17 : vector<8x128xf32> to vector<1x8x128xf32>
    %112 = tpu.concatenate %104, %105, %106, %107, %108, %109, %110, %111 in 0 : vector<1x8x128xf32>, vector<1x8x128xf32>, vector<1x8x128xf32>, vector<1x8x128xf32>, vector<1x8x128xf32>, vector<1x8x128xf32>, vector<1x8x128xf32>, vector<1x8x128xf32> -> vector<8x8x128xf32>
    %c0_17 = arith.constant 0 : index
    %c0_18 = arith.constant 0 : index
    %c0_19 = arith.constant 0 : index
    %113 = vector.load %arg4[%c0_17, %c0_18, %c0_19] : memref<8x8x128xf32, #tpu.memory_space<vmem>>, vector<8x8x128xf32>
    tpu.vector_store %arg4[%c0_17, %c0_18, %c0_19], %112 {strides = array<i32>} : memref<8x8x128xf32, #tpu.memory_space<vmem>>, vector<8x8x128xf32>,
    return
  }
  func.func @transform_0(%arg0: i32) -> i32 {
    %c0_i32 = arith.constant 0 : i32
    %c0_i32_0 = arith.constant 0 : i32
    return %c0_i32 : i32
  }
  func.func @transform_1(%arg0: i32) -> (i32, i32, i32, i32) {
    %c0_i32 = arith.constant 0 : i32
    %c0_i32_0 = arith.constant 0 : i32
    %c0_i32_1 = arith.constant 0 : i32
    %c0_i32_2 = arith.constant 0 : i32
    %c0_i32_3 = arith.constant 0 : i32
    return %c0_i32, %c0_i32_0, %c0_i32_1, %c0_i32_2 : i32, i32, i32, i32
  }
  func.func @transform_2(%arg0: i32) -> (i32, i32, i32) {
    %c0_i32 = arith.constant 0 : i32
    %c0_i32_0 = arith.constant 0 : i32
    %c0_i32_1 = arith.constant 0 : i32
    return %c0_i32, %arg0, %c0_i32_0 : i32, i32, i32
  }
  func.func @transform_3(%arg0: i32) -> (i32, i32, i32) {
    %c0_i32 = arith.constant 0 : i32
    %c0_i32_0 = arith.constant 0 : i32
    %c0_i32_1 = arith.constant 0 : i32
    return %c0_i32, %arg0, %c0_i32_0 : i32, i32, i32
  }
}

</mosaic_0001>

<llo_original>
// kernel: tpu_custom_call.1
$region0: #{tpu_custom_call.1}
  #allocation0 [shape = 'u32[]', space=smem, size = 0x4, offset = 0x4, fixed_abs, tag = 'smem constant byte address 0x4 - core index']
  #allocation1 [shape = 'u32[144,128]{1,0:T(1,128)}', space=vmem, size = 0x12000, scoped, tag = 'internal scratch']
  %s0 = inlined_call_operand.vmem [shape: f32[8], index: 0, kind: input, shape index: {}]
  %s1 = inlined_call_operand.vmem [shape: f32[3,32,8,4], index: 1, kind: input, shape index: {}]
  %s2 = inlined_call_operand.vmem [shape: f32[2,8,128], index: 2, kind: input, shape index: {}]
  %s3 = inlined_call_operand.hbm [shape: f32[8,8,128], index: 3, kind: output, shape index: {}]
  %s4 = sld [smem:[#allocation0]]
  $region26: #{tpu_custom_call.1} parent=0
    _
  %s6 = ssub.s32 1, %s4
  %s7 = scalar_select 0, %s6, %s4
  $region1: #{tpu_custom_call.1} parent=0
    #allocation2 [shape = 'u8[512]{0}', space=smem, size = 0x200, scoped, tag = 'input window, operand 0, single buffered']
    #allocation3 [shape = 's32[1]{0}', space=sflag, size = 0x4, scoped, tag = 'scoped memory for tpu_custom_call.1']
    #allocation4 [shape = 's32[1]{0}', space=sflag, size = 0x4, scoped, tag = 'scoped memory for tpu_custom_call.1']
    #allocation5 [shape = 'u8[32768]{0}', space=vmem, size = 0x8000, scoped, tag = 'output window, operand 0, single buffered']
    %8 = vsyncpa [#allocation4], 0
    %9 = vsyncpa [#allocation3], 0
    // Predicated region
    $region2: #{tpu_custom_call.1} parent=1 // pred_check
      _
    $region3: #{tpu_custom_call.1} parent=1 // pred_check_branch
      %11 = sbr.rel (0) target = $region5
    $region4: #{tpu_custom_call.1} parent=1 // pred_region
      %s13 = ssub.s32 16, 16
      %14 = vsyncadd [#allocation4], %s13
      %s16 = sshll.u32 %s0, 4
      %s17 = int_to_ptr.vmem [resolvable:$true] %s16
      %19 = dma.vmem_to_smem %s17, 16, [#allocation2], [#allocation4]
    $region5: #{tpu_custom_call.1} parent=1 // pred_fallthru
      _
    // Predicated region
    $region6: #{tpu_custom_call.1} parent=1 // pred_check
      _
    $region7: #{tpu_custom_call.1} parent=1 // pred_check_branch
      %21 = sbr.rel (0) target = $region9
    $region8: #{tpu_custom_call.1} parent=1 // pred_region
      _
    $region9: #{tpu_custom_call.1} parent=1 // pred_fallthru
      _
    // Predicated region
    $region10: #{tpu_custom_call.1} parent=1 // pred_check
      _
    $region11: #{tpu_custom_call.1} parent=1 // pred_check_branch
      %23 = sbr.rel (0) target = $region13
    $region12: #{tpu_custom_call.1} parent=1 // pred_region
      _
    $region13: #{tpu_custom_call.1} parent=1 // pred_fallthru
      _
    // Predicated region
    $region14: #{tpu_custom_call.1} parent=1 // pred_check
      _
    $region15: #{tpu_custom_call.1} parent=1 // pred_check_branch
      %25 = sbr.rel (0) target = $region17
    $region16: #{tpu_custom_call.1} parent=1 // pred_region
      %26 = dma.done [#allocation4], 16
    $region17: #{tpu_custom_call.1} parent=1 // pred_fallthru
      _
    %27 = sfence
    %v28 = vld [vmem:[%s2] sm:$0xff]
    %s29 = scalar_lea.vmem %s2, 8
    %v30 = vld [vmem:[%s29] sm:$0xff]
    %v31 = vadd.f32 %v28, 1.0471976
    %v32 = vmul.f32 %v30, 0.1
    %v33 = vadd.f32 %v28, %v32
    %v34 = vmul.f32 %v30, -0.5
    %v35 = vand.u32 2147483647, %v31
    %vm36 = vcmp.le.f32.partialorder %v35, 0.7853982
    %vm37 = vcmp.lt.s32.totalorder %v31, 0
    %v38 = vand.u32 %v31, 2139095040
    %v39 = vshrl.u32 %v38, 23
    %v40 = vsub.s32 %v39, 127
    %v41 = vand.u32 2147483647, %v31
    %v42 = vand.u32 %v41, 8388607
    %v43 = vor.u32 %v42, 8388608
    %v44 = vsub.s32 0, %v43
    %v45 = vadd.s32 %v40, 1
    %vm46 = vcmp.gt.s32.totalorder %v45, 0
    %v47 = vsel %vm46, %v45, 0
    %v48 = vshrl.u32 %v47, 5
    %v49 = vand.u32 %v47, 31
    %v50 = vsub.s32 32, %v49
    %v51 = vshrl.u32 683565275, %v50
    %v52 = vshll.u32 683565275, %v49
    %v53 = vshrl.u32 2475754826, %v50
    %v54 = vor.u32 %v52, %v53
    %v55 = vshll.u32 2475754826, %v49
    %v56 = vshrl.u32 2131351028, %v50
    %v57 = vor.u32 %v55, %v56
    %v58 = vshll.u32 2131351028, %v49
    %v59 = vshrl.u32 2102212464, %v50
    %v60 = vor.u32 %v58, %v59
    %v61 = vshll.u32 2102212464, %v49
    %v62 = vshrl.u32 920167782, %v50
    %v63 = vor.u32 %v61, %v62
    %v64 = vshll.u32 920167782, %v49
    %v65 = vshrl.u32 1326507024, %v50
    %v66 = vor.u32 %v64, %v65
    %vm67 = vcmp.lt.s32.totalorder %v48, 1
    %vm68 = vcmp.lt.s32.totalorder %v48, 2
    %vm69 = vcmp.lt.s32.totalorder %v48, 3
    %vm70 = vcmp.lt.s32.totalorder %v48, 4
    %v71 = vsel %vm67, %v51, %v54
    %v72 = vsel %vm70, %v60, 2102212464
    %v73 = vsel %vm69, %v57, %v72
    %v74 = vsel %vm68, %v71, %v73
    %v75 = vsel %vm67, %v54, %v57
    %v76 = vsel %vm70, %v63, 920167782
    %v77 = vsel %vm69, %v60, %v76
    %v78 = vsel %vm68, %v75, %v77
    %v79 = vsel %vm67, %v57, %v60
    %v80 = vsel %vm70, %v66, 1326507024
    %v81 = vsel %vm69, %v63, %v80
    %v82 = vsel %vm68, %v79, %v81
    %v83 = vshll.u32 %v43, 8
    %v84 = vmul.u32.u64.compose %v83, %v82
    %v85 = vextract.low.u32 %v84
    %v86 = vextract.high.u32 %v84
    %v87 = vmul.u32.u64.compose %v83, %v78
    %v88 = vextract.low.u32 %v87
    %v89 = vextract.high.u32 %v87
    %v90 = vmul.u32 %v83, %v74
    %v91 = vadd.s32 %v86, %v88
    %vm92 = vc.u32 %v86, %v88
    %v93 = vadd.s32 %v89, 1
    %v94 = vsel %vm92, %v93, %v89
    %v95 = vadd.s32 %v90, %v94
    %v96 = vadd.s32 %v95, 536870912
    %v97 = vshrl.u32 %v96, 30
    %v98 = vshll.u32 %v97, 30
    %v99 = vsub.s32 %v95, %v98
    %vm100 = vcmp.lt.s32.totalorder %v99, 0
    %v101 = vsub.s32 0, %v99
    %v102 = vsel %vm100, %v101, %v99
    %v103 = vclz %v102
    %v104 = vsub.s32 %v103, 2
    %vm105 = vcmp.gt.s32.totalorder 0, %v104
    %v106 = vsel %vm105, 0, %v104
    %v107 = vsub.s32 32, %v106
    %v108 = vshll.u32 %v99, %v106
    %v109 = vshrl.u32 %v91, %v107
    %v110 = vor.u32 %v108, %v109
    %v111 = vsub.s32 4294967266, %v106
    %v112 = vadd.s32 %v111, 127
    %v113 = vshll.u32 %v112, 23
    %v114 = vor.u32 4788187, %v113
    %v115 = vand.u32 2147483647, %v114
    %v117 = vcvt.s32.f32 %v110
    %v118 = vmul.f32 %v117, %v115
    %v119 = vxor.u32 %v118, 2147483648
    %v120 = vsel %vm37, %v119, %v118
    %v121 = vsub.s32 4, %v97
    %v122 = vsel %vm37, %v121, %v97
    %v123 = vsel %vm36, %v31, %v120
    %v124 = vsel %vm36, 0, %v122
    %v125 = vcosq.f32.pop %v123
    %v126 = vsinq.f32.pop %v123
    %vm127 = vweird.f32 %v31
    %v128 = vadd.s32 %v124, 3
    %v129 = vand.u32 %v128, 3
    %vm130 = vcmp.lt.s32.totalorder %v129, 2
    %vm131 = vcmp.eq.s32.totalorder %v129, 0
    %v132 = vxor.u32 %v126, 2147483648
    %v133 = vsel %vm131, %v125, %v132
    %vm134 = vcmp.eq.s32.totalorder %v129, 2
    %v135 = vxor.u32 %v125, 2147483648
    %v136 = vsel %vm134, %v135, %v126
    %v137 = vsel %vm130, %v133, %v136
    %v138 = vsel %vm127, nan, %v137
    %v139 = vsub.f32 %v138, 0.8660254
    %v140 = vsub.f32 %v34, %v139
    %v141 = vmul.f32 %v140, 0.1
    %v142 = vadd.f32 %v30, %v141
    %v143 = vld [vmem:[%s1] sm:$0xff]
    %v144 = vld [vmem:[%s1 + $0x8] sm:$0xff]
    %v145 = vld [vmem:[%s1 + $0x10] sm:$0xff]
    %v146 = vld [vmem:[%s1 + $0x18] sm:$0xff]
    %v147 = vld [vmem:[%s1 + $0x20] sm:$0xff]
    %v148 = vld [vmem:[%s1 + $0x28] sm:$0xff]
    %v149 = vld [vmem:[%s1 + $0x30] sm:$0xff]
    %v150 = vld [vmem:[%s1 + $0x38] sm:$0xff]
    %v151 = vld [vmem:[%s1 + $0x40] sm:$0xff]
    %v152 = vld [vmem:[%s1 + $0x48] sm:$0xff]
    %v153 = vld [vmem:[%s1 + $0x50] sm:$0xff]
    %v154 = vld [vmem:[%s1 + $0x58] sm:$0xff]
    %v155 = vld [vmem:[%s1 + $0x60] sm:$0xff]
    %v156 = vld [vmem:[%s1 + $0x68] sm:$0xff]
    %v157 = vld [vmem:[%s1 + $0x70] sm:$0xff]
    %v158 = vld [vmem:[%s1 + $0x78] sm:$0xff]
    %v159 = vld [vmem:[%s1 + $0x80] sm:$0xff]
    %v160 = vld [vmem:[%s1 + $0x88] sm:$0xff]
    %v161 = vld [vmem:[%s1 + $0x90] sm:$0xff]
    %v162 = vld [vmem:[%s1 + $0x98] sm:$0xff]
    %v163 = vld [vmem:[%s1 + $0xa0] sm:$0xff]
    %v164 = vld [vmem:[%s1 + $0xa8] sm:$0xff]
    %v165 = vld [vmem:[%s1 + $0xb0] sm:$0xff]
    %v166 = vld [vmem:[%s1 + $0xb8] sm:$0xff]
    %v167 = vld [vmem:[%s1 + $0xc0] sm:$0xff]
    %v168 = vld [vmem:[%s1 + $0xc8] sm:$0xff]
    %v169 = vld [vmem:[%s1 + $0xd0] sm:$0xff]
    %v170 = vld [vmem:[%s1 + $0xd8] sm:$0xff]
    %v171 = vld [vmem:[%s1 + $0xe0] sm:$0xff]
    %v172 = vld [vmem:[%s1 + $0xe8] sm:$0xff]
    %v173 = vld [vmem:[%s1 + $0xf0] sm:$0xff]
    %v174 = vld [vmem:[%s1 + $0xf8] sm:$0xff]
    %v175 = vld [vmem:[%s1 + $0x100] sm:$0xff]
    %v176 = vld [vmem:[%s1 + $0x108] sm:$0xff]
    %v177 = vld [vmem:[%s1 + $0x110] sm:$0xff]
    %v178 = vld [vmem:[%s1 + $0x118] sm:$0xff]
    %v179 = vld [vmem:[%s1 + $0x120] sm:$0xff]
    %v180 = vld [vmem:[%s1 + $0x128] sm:$0xff]
    %v181 = vld [vmem:[%s1 + $0x130] sm:$0xff]
    %v182 = vld [vmem:[%s1 + $0x138] sm:$0xff]
    %v183 = vld [vmem:[%s1 + $0x140] sm:$0xff]
    %v184 = vld [vmem:[%s1 + $0x148] sm:$0xff]
    %v185 = vld [vmem:[%s1 + $0x150] sm:$0xff]
    %v186 = vld [vmem:[%s1 + $0x158] sm:$0xff]
    %v187 = vld [vmem:[%s1 + $0x160] sm:$0xff]
    %v188 = vld [vmem:[%s1 + $0x168] sm:$0xff]
    %v189 = vld [vmem:[%s1 + $0x170] sm:$0xff]
    %v190 = vld [vmem:[%s1 + $0x178] sm:$0xff]
    %v191 = vld [vmem:[%s1 + $0x180] sm:$0xff]
    %v192 = vld [vmem:[%s1 + $0x188] sm:$0xff]
    %v193 = vld [vmem:[%s1 + $0x190] sm:$0xff]
    %v194 = vld [vmem:[%s1 + $0x198] sm:$0xff]
    %v195 = vld [vmem:[%s1 + $0x1a0] sm:$0xff]
    %v196 = vld [vmem:[%s1 + $0x1a8] sm:$0xff]
    %v197 = vld [vmem:[%s1 + $0x1b0] sm:$0xff]
    %v198 = vld [vmem:[%s1 + $0x1b8] sm:$0xff]
    %v199 = vld [vmem:[%s1 + $0x1c0] sm:$0xff]
    %v200 = vld [vmem:[%s1 + $0x1c8] sm:$0xff]
    %v201 = vld [vmem:[%s1 + $0x1d0] sm:$0xff]
    %v202 = vld [vmem:[%s1 + $0x1d8] sm:$0xff]
    %v203 = vld [vmem:[%s1 + $0x1e0] sm:$0xff]
    %v204 = vld [vmem:[%s1 + $0x1e8] sm:$0xff]
    %v205 = vld [vmem:[%s1 + $0x1f0] sm:$0xff]
    %v206 = vld [vmem:[%s1 + $0x1f8] sm:$0xff]
    %v207 = vld [vmem:[%s1 + $0x200] sm:$0xff]
    %v208 = vld [vmem:[%s1 + $0x208] sm:$0xff]
    %v209 = vld [vmem:[%s1 + $0x210] sm:$0xff]
    %v210 = vld [vmem:[%s1 + $0x218] sm:$0xff]
    %v211 = vld [vmem:[%s1 + $0x220] sm:$0xff]
    %v212 = vld [vmem:[%s1 + $0x228] sm:$0xff]
    %v213 = vld [vmem:[%s1 + $0x230] sm:$0xff]
    %v214 = vld [vmem:[%s1 + $0x238] sm:$0xff]
    %v215 = vld [vmem:[%s1 + $0x240] sm:$0xff]
    %v216 = vld [vmem:[%s1 + $0x248] sm:$0xff]
    %v217 = vld [vmem:[%s1 + $0x250] sm:$0xff]
    %v218 = vld [vmem:[%s1 + $0x258] sm:$0xff]
    %v219 = vld [vmem:[%s1 + $0x260] sm:$0xff]
    %v220 = vld [vmem:[%s1 + $0x268] sm:$0xff]
    %v221 = vld [vmem:[%s1 + $0x270] sm:$0xff]
    %v222 = vld [vmem:[%s1 + $0x278] sm:$0xff]
    %v223 = vld [vmem:[%s1 + $0x280] sm:$0xff]
    %v224 = vld [vmem:[%s1 + $0x288] sm:$0xff]
    %v225 = vld [vmem:[%s1 + $0x290] sm:$0xff]
    %v226 = vld [vmem:[%s1 + $0x298] sm:$0xff]
    %v227 = vld [vmem:[%s1 + $0x2a0] sm:$0xff]
    %v228 = vld [vmem:[%s1 + $0x2a8] sm:$0xff]
    %v229 = vld [vmem:[%s1 + $0x2b0] sm:$0xff]
    %v230 = vld [vmem:[%s1 + $0x2b8] sm:$0xff]
    %v231 = vld [vmem:[%s1 + $0x2c0] sm:$0xff]
    %v232 = vld [vmem:[%s1 + $0x2c8] sm:$0xff]
    %v233 = vld [vmem:[%s1 + $0x2d0] sm:$0xff]
    %v234 = vld [vmem:[%s1 + $0x2d8] sm:$0xff]
    %v235 = vld [vmem:[%s1 + $0x2e0] sm:$0xff]
    %v236 = vld [vmem:[%s1 + $0x2e8] sm:$0xff]
    %v237 = vld [vmem:[%s1 + $0x2f0] sm:$0xff]
    %v238 = vld [vmem:[%s1 + $0x2f8] sm:$0xff]
    %240 = vset.pattern.permute.xlu0 0
    %241 = vperm.xlu0 %240, %v143
    %v242 = vpop.permute.xlu0 %241
    %245 = vset.pattern.permute.xlu0 0
    %246 = vperm.xlu0 %245, %v144
    %v247 = vpop.permute.xlu0 %246
    %250 = vset.pattern.permute.xlu0 0
    %251 = vperm.xlu0 %250, %v145
    %v252 = vpop.permute.xlu0 %251
    %255 = vset.pattern.permute.xlu0 0
    %256 = vperm.xlu0 %255, %v146
    %v257 = vpop.permute.xlu0 %256
    %260 = vset.pattern.permute.xlu0 0
    %261 = vperm.xlu0 %260, %v147
    %v262 = vpop.permute.xlu0 %261
    %265 = vset.pattern.permute.xlu0 0
    %266 = vperm.xlu0 %265, %v148
    %v267 = vpop.permute.xlu0 %266
    %270 = vset.pattern.permute.xlu0 0
    %271 = vperm.xlu0 %270, %v149
    %v272 = vpop.permute.xlu0 %271
    %275 = vset.pattern.permute.xlu0 0
    %276 = vperm.xlu0 %275, %v150
    %v277 = vpop.permute.xlu0 %276
    %280 = vset.pattern.permute.xlu0 0
    %281 = vperm.xlu0 %280, %v151
    %v282 = vpop.permute.xlu0 %281
    %285 = vset.pattern.permute.xlu0 0
    %286 = vperm.xlu0 %285, %v152
    %v287 = vpop.permute.xlu0 %286
    %290 = vset.pattern.permute.xlu0 0
    %291 = vperm.xlu0 %290, %v153
    %v292 = vpop.permute.xlu0 %291
    %295 = vset.pattern.permute.xlu0 0
    %296 = vperm.xlu0 %295, %v154
    %v297 = vpop.permute.xlu0 %296
    %300 = vset.pattern.permute.xlu0 0
    %301 = vperm.xlu0 %300, %v155
    %v302 = vpop.permute.xlu0 %301
    %305 = vset.pattern.permute.xlu0 0
    %306 = vperm.xlu0 %305, %v156
    %v307 = vpop.permute.xlu0 %306
    %310 = vset.pattern.permute.xlu0 0
    %311 = vperm.xlu0 %310, %v157
    %v312 = vpop.permute.xlu0 %311
    %315 = vset.pattern.permute.xlu0 0
    %316 = vperm.xlu0 %315, %v158
    %v317 = vpop.permute.xlu0 %316
    %320 = vset.pattern.permute.xlu0 0
    %321 = vperm.xlu0 %320, %v159
    %v322 = vpop.permute.xlu0 %321
    %325 = vset.pattern.permute.xlu0 0
    %326 = vperm.xlu0 %325, %v160
    %v327 = vpop.permute.xlu0 %326
    %330 = vset.pattern.permute.xlu0 0
    %331 = vperm.xlu0 %330, %v161
    %v332 = vpop.permute.xlu0 %331
    %335 = vset.pattern.permute.xlu0 0
    %336 = vperm.xlu0 %335, %v162
    %v337 = vpop.permute.xlu0 %336
    %340 = vset.pattern.permute.xlu0 0
    %341 = vperm.xlu0 %340, %v163
    %v342 = vpop.permute.xlu0 %341
    %345 = vset.pattern.permute.xlu0 0
    %346 = vperm.xlu0 %345, %v164
    %v347 = vpop.permute.xlu0 %346
    %350 = vset.pattern.permute.xlu0 0
    %351 = vperm.xlu0 %350, %v165
    %v352 = vpop.permute.xlu0 %351
    %355 = vset.pattern.permute.xlu0 0
    %356 = vperm.xlu0 %355, %v166
    %v357 = vpop.permute.xlu0 %356
    %360 = vset.pattern.permute.xlu0 0
    %361 = vperm.xlu0 %360, %v167
    %v362 = vpop.permute.xlu0 %361
    %365 = vset.pattern.permute.xlu0 0
    %366 = vperm.xlu0 %365, %v168
    %v367 = vpop.permute.xlu0 %366
    %370 = vset.pattern.permute.xlu0 0
    %371 = vperm.xlu0 %370, %v169
    %v372 = vpop.permute.xlu0 %371
    %375 = vset.pattern.permute.xlu0 0
    %376 = vperm.xlu0 %375, %v170
    %v377 = vpop.permute.xlu0 %376
    %380 = vset.pattern.permute.xlu0 0
    %381 = vperm.xlu0 %380, %v171
    %v382 = vpop.permute.xlu0 %381
    %385 = vset.pattern.permute.xlu0 0
    %386 = vperm.xlu0 %385, %v172
    %v387 = vpop.permute.xlu0 %386
    %390 = vset.pattern.permute.xlu0 0
    %391 = vperm.xlu0 %390, %v173
    %v392 = vpop.permute.xlu0 %391
    %395 = vset.pattern.permute.xlu0 0
    %396 = vperm.xlu0 %395, %v174
    %v397 = vpop.permute.xlu0 %396
    %400 = vset.pattern.permute.xlu0 0
    %401 = vperm.xlu0 %400, %v175
    %v402 = vpop.permute.xlu0 %401
    %405 = vset.pattern.permute.xlu0 0
    %406 = vperm.xlu0 %405, %v176
    %v407 = vpop.permute.xlu0 %406
    %410 = vset.pattern.permute.xlu0 0
    %411 = vperm.xlu0 %410, %v177
    %v412 = vpop.permute.xlu0 %411
    %415 = vset.pattern.permute.xlu0 0
    %416 = vperm.xlu0 %415, %v178
    %v417 = vpop.permute.xlu0 %416
    %420 = vset.pattern.permute.xlu0 0
    %421 = vperm.xlu0 %420, %v179
    %v422 = vpop.permute.xlu0 %421
    %425 = vset.pattern.permute.xlu0 0
    %426 = vperm.xlu0 %425, %v180
    %v427 = vpop.permute.xlu0 %426
    %430 = vset.pattern.permute.xlu0 0
    %431 = vperm.xlu0 %430, %v181
    %v432 = vpop.permute.xlu0 %431
    %435 = vset.pattern.permute.xlu0 0
    %436 = vperm.xlu0 %435, %v182
    %v437 = vpop.permute.xlu0 %436
    %440 = vset.pattern.permute.xlu0 0
    %441 = vperm.xlu0 %440, %v183
    %v442 = vpop.permute.xlu0 %441
    %445 = vset.pattern.permute.xlu0 0
    %446 = vperm.xlu0 %445, %v184
    %v447 = vpop.permute.xlu0 %446
    %450 = vset.pattern.permute.xlu0 0
    %451 = vperm.xlu0 %450, %v185
    %v452 = vpop.permute.xlu0 %451
    %455 = vset.pattern.permute.xlu0 0
    %456 = vperm.xlu0 %455, %v186
    %v457 = vpop.permute.xlu0 %456
    %460 = vset.pattern.permute.xlu0 0
    %461 = vperm.xlu0 %460, %v187
    %v462 = vpop.permute.xlu0 %461
    %465 = vset.pattern.permute.xlu0 0
    %466 = vperm.xlu0 %465, %v188
    %v467 = vpop.permute.xlu0 %466
    %470 = vset.pattern.permute.xlu0 0
    %471 = vperm.xlu0 %470, %v189
    %v472 = vpop.permute.xlu0 %471
    %475 = vset.pattern.permute.xlu0 0
    %476 = vperm.xlu0 %475, %v190
    %v477 = vpop.permute.xlu0 %476
    %480 = vset.pattern.permute.xlu0 0
    %481 = vperm.xlu0 %480, %v191
    %v482 = vpop.permute.xlu0 %481
    %485 = vset.pattern.permute.xlu0 0
    %486 = vperm.xlu0 %485, %v192
    %v487 = vpop.permute.xlu0 %486
    %490 = vset.pattern.permute.xlu0 0
    %491 = vperm.xlu0 %490, %v193
    %v492 = vpop.permute.xlu0 %491
    %495 = vset.pattern.permute.xlu0 0
    %496 = vperm.xlu0 %495, %v194
    %v497 = vpop.permute.xlu0 %496
    %500 = vset.pattern.permute.xlu0 0
    %501 = vperm.xlu0 %500, %v195
    %v502 = vpop.permute.xlu0 %501
    %505 = vset.pattern.permute.xlu0 0
    %506 = vperm.xlu0 %505, %v196
    %v507 = vpop.permute.xlu0 %506
    %510 = vset.pattern.permute.xlu0 0
    %511 = vperm.xlu0 %510, %v197
    %v512 = vpop.permute.xlu0 %511
    %515 = vset.pattern.permute.xlu0 0
    %516 = vperm.xlu0 %515, %v198
    %v517 = vpop.permute.xlu0 %516
    %520 = vset.pattern.permute.xlu0 0
    %521 = vperm.xlu0 %520, %v199
    %v522 = vpop.permute.xlu0 %521
    %525 = vset.pattern.permute.xlu0 0
    %526 = vperm.xlu0 %525, %v200
    %v527 = vpop.permute.xlu0 %526
    %530 = vset.pattern.permute.xlu0 0
    %531 = vperm.xlu0 %530, %v201
    %v532 = vpop.permute.xlu0 %531
    %535 = vset.pattern.permute.xlu0 0
    %536 = vperm.xlu0 %535, %v202
    %v537 = vpop.permute.xlu0 %536
    %540 = vset.pattern.permute.xlu0 0
    %541 = vperm.xlu0 %540, %v203
    %v542 = vpop.permute.xlu0 %541
    %545 = vset.pattern.permute.xlu0 0
    %546 = vperm.xlu0 %545, %v204
    %v547 = vpop.permute.xlu0 %546
    %550 = vset.pattern.permute.xlu0 0
    %551 = vperm.xlu0 %550, %v205
    %v552 = vpop.permute.xlu0 %551
    %555 = vset.pattern.permute.xlu0 0
    %556 = vperm.xlu0 %555, %v206
    %v557 = vpop.permute.xlu0 %556
    %560 = vset.pattern.permute.xlu0 0
    %561 = vperm.xlu0 %560, %v207
    %v562 = vpop.permute.xlu0 %561
    %565 = vset.pattern.permute.xlu0 0
    %566 = vperm.xlu0 %565, %v208
    %v567 = vpop.permute.xlu0 %566
    %570 = vset.pattern.permute.xlu0 0
    %571 = vperm.xlu0 %570, %v209
    %v572 = vpop.permute.xlu0 %571
    %575 = vset.pattern.permute.xlu0 0
    %576 = vperm.xlu0 %575, %v210
    %v577 = vpop.permute.xlu0 %576
    %580 = vset.pattern.permute.xlu0 0
    %581 = vperm.xlu0 %580, %v211
    %v582 = vpop.permute.xlu0 %581
    %585 = vset.pattern.permute.xlu0 0
    %586 = vperm.xlu0 %585, %v212
    %v587 = vpop.permute.xlu0 %586
    %590 = vset.pattern.permute.xlu0 0
    %591 = vperm.xlu0 %590, %v213
    %v592 = vpop.permute.xlu0 %591
    %595 = vset.pattern.permute.xlu0 0
    %596 = vperm.xlu0 %595, %v214
    %v597 = vpop.permute.xlu0 %596
    %600 = vset.pattern.permute.xlu0 0
    %601 = vperm.xlu0 %600, %v215
    %v602 = vpop.permute.xlu0 %601
    %605 = vset.pattern.permute.xlu0 0
    %606 = vperm.xlu0 %605, %v216
    %v607 = vpop.permute.xlu0 %606
    %610 = vset.pattern.permute.xlu0 0
    %611 = vperm.xlu0 %610, %v217
    %v612 = vpop.permute.xlu0 %611
    %615 = vset.pattern.permute.xlu0 0
    %616 = vperm.xlu0 %615, %v218
    %v617 = vpop.permute.xlu0 %616
    %620 = vset.pattern.permute.xlu0 0
    %621 = vperm.xlu0 %620, %v219
    %v622 = vpop.permute.xlu0 %621
    %625 = vset.pattern.permute.xlu0 0
    %626 = vperm.xlu0 %625, %v220
    %v627 = vpop.permute.xlu0 %626
    %630 = vset.pattern.permute.xlu0 0
    %631 = vperm.xlu0 %630, %v221
    %v632 = vpop.permute.xlu0 %631
    %635 = vset.pattern.permute.xlu0 0
    %636 = vperm.xlu0 %635, %v222
    %v637 = vpop.permute.xlu0 %636
    %640 = vset.pattern.permute.xlu0 0
    %641 = vperm.xlu0 %640, %v223
    %v642 = vpop.permute.xlu0 %641
    %645 = vset.pattern.permute.xlu0 0
    %646 = vperm.xlu0 %645, %v224
    %v647 = vpop.permute.xlu0 %646
    %650 = vset.pattern.permute.xlu0 0
    %651 = vperm.xlu0 %650, %v225
    %v652 = vpop.permute.xlu0 %651
    %655 = vset.pattern.permute.xlu0 0
    %656 = vperm.xlu0 %655, %v226
    %v657 = vpop.permute.xlu0 %656
    %660 = vset.pattern.permute.xlu0 0
    %661 = vperm.xlu0 %660, %v227
    %v662 = vpop.permute.xlu0 %661
    %665 = vset.pattern.permute.xlu0 0
    %666 = vperm.xlu0 %665, %v228
    %v667 = vpop.permute.xlu0 %666
    %670 = vset.pattern.permute.xlu0 0
    %671 = vperm.xlu0 %670, %v229
    %v672 = vpop.permute.xlu0 %671
    %675 = vset.pattern.permute.xlu0 0
    %676 = vperm.xlu0 %675, %v230
    %v677 = vpop.permute.xlu0 %676
    %680 = vset.pattern.permute.xlu0 0
    %681 = vperm.xlu0 %680, %v231
    %v682 = vpop.permute.xlu0 %681
    %685 = vset.pattern.permute.xlu0 0
    %686 = vperm.xlu0 %685, %v232
    %v687 = vpop.permute.xlu0 %686
    %690 = vset.pattern.permute.xlu0 0
    %691 = vperm.xlu0 %690, %v233
    %v692 = vpop.permute.xlu0 %691
    %695 = vset.pattern.permute.xlu0 0
    %696 = vperm.xlu0 %695, %v234
    %v697 = vpop.permute.xlu0 %696
    %700 = vset.pattern.permute.xlu0 0
    %701 = vperm.xlu0 %700, %v235
    %v702 = vpop.permute.xlu0 %701
    %705 = vset.pattern.permute.xlu0 0
    %706 = vperm.xlu0 %705, %v236
    %v707 = vpop.permute.xlu0 %706
    %710 = vset.pattern.permute.xlu0 0
    %711 = vperm.xlu0 %710, %v237
    %v712 = vpop.permute.xlu0 %711
    %715 = vset.pattern.permute.xlu0 0
    %716 = vperm.xlu0 %715, %v238
    %v717 = vpop.permute.xlu0 %716
    %v719 = vmul.f32 %v242, %v28
    %v720 = vmul.f32 %v247, %v28
    %v721 = vmul.f32 %v252, %v28
    %v722 = vmul.f32 %v257, %v28
    %v723 = vmul.f32 %v262, %v28
    %v724 = vmul.f32 %v267, %v28
    %v725 = vmul.f32 %v272, %v28
    %v726 = vmul.f32 %v277, %v28
    %v727 = vmul.f32 %v282, %v28
    %v728 = vmul.f32 %v287, %v28
    %v729 = vmul.f32 %v292, %v28
    %v730 = vmul.f32 %v297, %v28
    %v731 = vmul.f32 %v302, %v28
    %v732 = vmul.f32 %v307, %v28
    %v733 = vmul.f32 %v312, %v28
    %v734 = vmul.f32 %v317, %v28
    %v735 = vmul.f32 %v322, %v28
    %v736 = vmul.f32 %v327, %v28
    %v737 = vmul.f32 %v332, %v28
    %v738 = vmul.f32 %v337, %v28
    %v739 = vmul.f32 %v342, %v28
    %v740 = vmul.f32 %v347, %v28
    %v741 = vmul.f32 %v352, %v28
    %v742 = vmul.f32 %v357, %v28
    %v743 = vmul.f32 %v362, %v28
    %v744 = vmul.f32 %v367, %v28
    %v745 = vmul.f32 %v372, %v28
    %v746 = vmul.f32 %v377, %v28
    %v747 = vmul.f32 %v382, %v28
    %v748 = vmul.f32 %v387, %v28
    %v749 = vmul.f32 %v392, %v28
    %v750 = vmul.f32 %v397, %v28
    %v751 = vmul.f32 %v402, %v33
    %v752 = vmul.f32 %v407, %v33
    %v753 = vmul.f32 %v412, %v33
    %v754 = vmul.f32 %v417, %v33
    %v755 = vmul.f32 %v422, %v33
    %v756 = vmul.f32 %v427, %v33
    %v757 = vmul.f32 %v432, %v33
    %v758 = vmul.f32 %v437, %v33
    %v759 = vmul.f32 %v442, %v33
    %v760 = vmul.f32 %v447, %v33
    %v761 = vmul.f32 %v452, %v33
    %v762 = vmul.f32 %v457, %v33
    %v763 = vmul.f32 %v462, %v33
    %v764 = vmul.f32 %v467, %v33
    %v765 = vmul.f32 %v472, %v33
    %v766 = vmul.f32 %v477, %v33
    %v767 = vmul.f32 %v482, %v33
    %v768 = vmul.f32 %v487, %v33
    %v769 = vmul.f32 %v492, %v33
    %v770 = vmul.f32 %v497, %v33
    %v771 = vmul.f32 %v502, %v33
    %v772 = vmul.f32 %v507, %v33
    %v773 = vmul.f32 %v512, %v33
    %v774 = vmul.f32 %v517, %v33
    %v775 = vmul.f32 %v522, %v33
    %v776 = vmul.f32 %v527, %v33
    %v777 = vmul.f32 %v532, %v33
    %v778 = vmul.f32 %v537, %v33
    %v779 = vmul.f32 %v542, %v33
    %v780 = vmul.f32 %v547, %v33
    %v781 = vmul.f32 %v552, %v33
    %v782 = vmul.f32 %v557, %v33
    %v783 = vmul.f32 %v562, %v28
    %v784 = vmul.f32 %v567, %v28
    %v785 = vmul.f32 %v572, %v28
    %v786 = vmul.f32 %v577, %v28
    %v787 = vmul.f32 %v582, %v28
    %v788 = vmul.f32 %v587, %v28
    %v789 = vmul.f32 %v592, %v28
    %v790 = vmul.f32 %v597, %v28
    %v791 = vmul.f32 %v602, %v28
    %v792 = vmul.f32 %v607, %v28
    %v793 = vmul.f32 %v612, %v28
    %v794 = vmul.f32 %v617, %v28
    %v795 = vmul.f32 %v622, %v28
    %v796 = vmul.f32 %v627, %v28
    %v797 = vmul.f32 %v632, %v28
    %v798 = vmul.f32 %v637, %v28
    %v799 = vmul.f32 %v642, %v28
    %v800 = vmul.f32 %v647, %v28
    %v801 = vmul.f32 %v652, %v28
    %v802 = vmul.f32 %v657, %v28
    %v803 = vmul.f32 %v662, %v28
    %v804 = vmul.f32 %v667, %v28
    %v805 = vmul.f32 %v672, %v28
    %v806 = vmul.f32 %v677, %v28
    %v807 = vmul.f32 %v682, %v28
    %v808 = vmul.f32 %v687, %v28
    %v809 = vmul.f32 %v692, %v28
    %v810 = vmul.f32 %v697, %v28
    %v811 = vmul.f32 %v702, %v28
    %v812 = vmul.f32 %v707, %v28
    %v813 = vmul.f32 %v712, %v28
    %v814 = vmul.f32 %v717, %v28
    %815 = vset.pattern.permute.xlu0 1
    %816 = vperm.xlu0 %815, %v143
    %v817 = vpop.permute.xlu0 %816
    %819 = vset.pattern.permute.xlu0 1
    %820 = vperm.xlu0 %819, %v144
    %v821 = vpop.permute.xlu0 %820
    %823 = vset.pattern.permute.xlu0 1
    %824 = vperm.xlu0 %823, %v145
    %v825 = vpop.permute.xlu0 %824
    %827 = vset.pattern.permute.xlu0 1
    %828 = vperm.xlu0 %827, %v146
    %v829 = vpop.permute.xlu0 %828
    %831 = vset.pattern.permute.xlu0 1
    %832 = vperm.xlu0 %831, %v147
    %v833 = vpop.permute.xlu0 %832
    %835 = vset.pattern.permute.xlu0 1
    %836 = vperm.xlu0 %835, %v148
    %v837 = vpop.permute.xlu0 %836
    %839 = vset.pattern.permute.xlu0 1
    %840 = vperm.xlu0 %839, %v149
    %v841 = vpop.permute.xlu0 %840
    %843 = vset.pattern.permute.xlu0 1
    %844 = vperm.xlu0 %843, %v150
    %v845 = vpop.permute.xlu0 %844
    %847 = vset.pattern.permute.xlu0 1
    %848 = vperm.xlu0 %847, %v151
    %v849 = vpop.permute.xlu0 %848
    %851 = vset.pattern.permute.xlu0 1
    %852 = vperm.xlu0 %851, %v152
    %v853 = vpop.permute.xlu0 %852
    %855 = vset.pattern.permute.xlu0 1
    %856 = vperm.xlu0 %855, %v153
    %v857 = vpop.permute.xlu0 %856
    %859 = vset.pattern.permute.xlu0 1
    %860 = vperm.xlu0 %859, %v154
    %v861 = vpop.permute.xlu0 %860
    %863 = vset.pattern.permute.xlu0 1
    %864 = vperm.xlu0 %863, %v155
    %v865 = vpop.permute.xlu0 %864
    %867 = vset.pattern.permute.xlu0 1
    %868 = vperm.xlu0 %867, %v156
    %v869 = vpop.permute.xlu0 %868
    %871 = vset.pattern.permute.xlu0 1
    %872 = vperm.xlu0 %871, %v157
    %v873 = vpop.permute.xlu0 %872
    %875 = vset.pattern.permute.xlu0 1
    %876 = vperm.xlu0 %875, %v158
    %v877 = vpop.permute.xlu0 %876
    %879 = vset.pattern.permute.xlu0 1
    %880 = vperm.xlu0 %879, %v159
    %v881 = vpop.permute.xlu0 %880
    %883 = vset.pattern.permute.xlu0 1
    %884 = vperm.xlu0 %883, %v160
    %v885 = vpop.permute.xlu0 %884
    %887 = vset.pattern.permute.xlu0 1
    %888 = vperm.xlu0 %887, %v161
    %v889 = vpop.permute.xlu0 %888
    %891 = vset.pattern.permute.xlu0 1
    %892 = vperm.xlu0 %891, %v162
    %v893 = vpop.permute.xlu0 %892
    %895 = vset.pattern.permute.xlu0 1
    %896 = vperm.xlu0 %895, %v163
    %v897 = vpop.permute.xlu0 %896
    %899 = vset.pattern.permute.xlu0 1
    %900 = vperm.xlu0 %899, %v164
    %v901 = vpop.permute.xlu0 %900
    %903 = vset.pattern.permute.xlu0 1
    %904 = vperm.xlu0 %903, %v165
    %v905 = vpop.permute.xlu0 %904
    %907 = vset.pattern.permute.xlu0 1
    %908 = vperm.xlu0 %907, %v166
    %v909 = vpop.permute.xlu0 %908
    %911 = vset.pattern.permute.xlu0 1
    %912 = vperm.xlu0 %911, %v167
    %v913 = vpop.permute.xlu0 %912
    %915 = vset.pattern.permute.xlu0 1
    %916 = vperm.xlu0 %915, %v168
    %v917 = vpop.permute.xlu0 %916
    %919 = vset.pattern.permute.xlu0 1
    %920 = vperm.xlu0 %919, %v169
    %v921 = vpop.permute.xlu0 %920
    %923 = vset.pattern.permute.xlu0 1
    %924 = vperm.xlu0 %923, %v170
    %v925 = vpop.permute.xlu0 %924
    %927 = vset.pattern.permute.xlu0 1
    %928 = vperm.xlu0 %927, %v171
    %v929 = vpop.permute.xlu0 %928
    %931 = vset.pattern.permute.xlu0 1
    %932 = vperm.xlu0 %931, %v172
    %v933 = vpop.permute.xlu0 %932
    %935 = vset.pattern.permute.xlu0 1
    %936 = vperm.xlu0 %935, %v173
    %v937 = vpop.permute.xlu0 %936
    %939 = vset.pattern.permute.xlu0 1
    %940 = vperm.xlu0 %939, %v174
    %v941 = vpop.permute.xlu0 %940
    %943 = vset.pattern.permute.xlu0 1
    %944 = vperm.xlu0 %943, %v175
    %v945 = vpop.permute.xlu0 %944
    %947 = vset.pattern.permute.xlu0 1
    %948 = vperm.xlu0 %947, %v176
    %v949 = vpop.permute.xlu0 %948
    %951 = vset.pattern.permute.xlu0 1
    %952 = vperm.xlu0 %951, %v177
    %v953 = vpop.permute.xlu0 %952
    %955 = vset.pattern.permute.xlu0 1
    %956 = vperm.xlu0 %955, %v178
    %v957 = vpop.permute.xlu0 %956
    %959 = vset.pattern.permute.xlu0 1
    %960 = vperm.xlu0 %959, %v179
    %v961 = vpop.permute.xlu0 %960
    %963 = vset.pattern.permute.xlu0 1
    %964 = vperm.xlu0 %963, %v180
    %v965 = vpop.permute.xlu0 %964
    %967 = vset.pattern.permute.xlu0 1
    %968 = vperm.xlu0 %967, %v181
    %v969 = vpop.permute.xlu0 %968
    %971 = vset.pattern.permute.xlu0 1
    %972 = vperm.xlu0 %971, %v182
    %v973 = vpop.permute.xlu0 %972
    %975 = vset.pattern.permute.xlu0 1
    %976 = vperm.xlu0 %975, %v183
    %v977 = vpop.permute.xlu0 %976
    %979 = vset.pattern.permute.xlu0 1
    %980 = vperm.xlu0 %979, %v184
    %v981 = vpop.permute.xlu0 %980
    %983 = vset.pattern.permute.xlu0 1
    %984 = vperm.xlu0 %983, %v185
    %v985 = vpop.permute.xlu0 %984
    %987 = vset.pattern.permute.xlu0 1
    %988 = vperm.xlu0 %987, %v186
    %v989 = vpop.permute.xlu0 %988
    %991 = vset.pattern.permute.xlu0 1
    %992 = vperm.xlu0 %991, %v187
    %v993 = vpop.permute.xlu0 %992
    %995 = vset.pattern.permute.xlu0 1
    %996 = vperm.xlu0 %995, %v188
    %v997 = vpop.permute.xlu0 %996
    %999 = vset.pattern.permute.xlu0 1
    %1000 = vperm.xlu0 %999, %v189
    %v1001 = vpop.permute.xlu0 %1000
    %1003 = vset.pattern.permute.xlu0 1
    %1004 = vperm.xlu0 %1003, %v190
    %v1005 = vpop.permute.xlu0 %1004
    %1007 = vset.pattern.permute.xlu0 1
    %1008 = vperm.xlu0 %1007, %v191
    %v1009 = vpop.permute.xlu0 %1008
    %1011 = vset.pattern.permute.xlu0 1
    %1012 = vperm.xlu0 %1011, %v192
    %v1013 = vpop.permute.xlu0 %1012
    %1015 = vset.pattern.permute.xlu0 1
    %1016 = vperm.xlu0 %1015, %v193
    %v1017 = vpop.permute.xlu0 %1016
    %1019 = vset.pattern.permute.xlu0 1
    %1020 = vperm.xlu0 %1019, %v194
    %v1021 = vpop.permute.xlu0 %1020
    %1023 = vset.pattern.permute.xlu0 1
    %1024 = vperm.xlu0 %1023, %v195
    %v1025 = vpop.permute.xlu0 %1024
    %1027 = vset.pattern.permute.xlu0 1
    %1028 = vperm.xlu0 %1027, %v196
    %v1029 = vpop.permute.xlu0 %1028
    %1031 = vset.pattern.permute.xlu0 1
    %1032 = vperm.xlu0 %1031, %v197
    %v1033 = vpop.permute.xlu0 %1032
    %1035 = vset.pattern.permute.xlu0 1
    %1036 = vperm.xlu0 %1035, %v198
    %v1037 = vpop.permute.xlu0 %1036
    %1039 = vset.pattern.permute.xlu0 1
    %1040 = vperm.xlu0 %1039, %v199
    %v1041 = vpop.permute.xlu0 %1040
    %1043 = vset.pattern.permute.xlu0 1
    %1044 = vperm.xlu0 %1043, %v200
    %v1045 = vpop.permute.xlu0 %1044
    %1047 = vset.pattern.permute.xlu0 1
    %1048 = vperm.xlu0 %1047, %v201
    %v1049 = vpop.permute.xlu0 %1048
    %1051 = vset.pattern.permute.xlu0 1
    %1052 = vperm.xlu0 %1051, %v202
    %v1053 = vpop.permute.xlu0 %1052
    %1055 = vset.pattern.permute.xlu0 1
    %1056 = vperm.xlu0 %1055, %v203
    %v1057 = vpop.permute.xlu0 %1056
    %1059 = vset.pattern.permute.xlu0 1
    %1060 = vperm.xlu0 %1059, %v204
    %v1061 = vpop.permute.xlu0 %1060
    %1063 = vset.pattern.permute.xlu0 1
    %1064 = vperm.xlu0 %1063, %v205
    %v1065 = vpop.permute.xlu0 %1064
    %1067 = vset.pattern.permute.xlu0 1
    %1068 = vperm.xlu0 %1067, %v206
    %v1069 = vpop.permute.xlu0 %1068
    %1071 = vset.pattern.permute.xlu0 1
    %1072 = vperm.xlu0 %1071, %v207
    %v1073 = vpop.permute.xlu0 %1072
    %1075 = vset.pattern.permute.xlu0 1
    %1076 = vperm.xlu0 %1075, %v208
    %v1077 = vpop.permute.xlu0 %1076
    %1079 = vset.pattern.permute.xlu0 1
    %1080 = vperm.xlu0 %1079, %v209
    %v1081 = vpop.permute.xlu0 %1080
    %1083 = vset.pattern.permute.xlu0 1
    %1084 = vperm.xlu0 %1083, %v210
    %v1085 = vpop.permute.xlu0 %1084
    %1087 = vset.pattern.permute.xlu0 1
    %1088 = vperm.xlu0 %1087, %v211
    %v1089 = vpop.permute.xlu0 %1088
    %1091 = vset.pattern.permute.xlu0 1
    %1092 = vperm.xlu0 %1091, %v212
    %v1093 = vpop.permute.xlu0 %1092
    %1095 = vset.pattern.permute.xlu0 1
    %1096 = vperm.xlu0 %1095, %v213
    %v1097 = vpop.permute.xlu0 %1096
    %1099 = vset.pattern.permute.xlu0 1
    %1100 = vperm.xlu0 %1099, %v214
    %v1101 = vpop.permute.xlu0 %1100
    %1103 = vset.pattern.permute.xlu0 1
    %1104 = vperm.xlu0 %1103, %v215
    %v1105 = vpop.permute.xlu0 %1104
    %1107 = vset.pattern.permute.xlu0 1
    %1108 = vperm.xlu0 %1107, %v216
    %v1109 = vpop.permute.xlu0 %1108
    %1111 = vset.pattern.permute.xlu0 1
    %1112 = vperm.xlu0 %1111, %v217
    %v1113 = vpop.permute.xlu0 %1112
    %1115 = vset.pattern.permute.xlu0 1
    %1116 = vperm.xlu0 %1115, %v218
    %v1117 = vpop.permute.xlu0 %1116
    %1119 = vset.pattern.permute.xlu0 1
    %1120 = vperm.xlu0 %1119, %v219
    %v1121 = vpop.permute.xlu0 %1120
    %1123 = vset.pattern.permute.xlu0 1
    %1124 = vperm.xlu0 %1123, %v220
    %v1125 = vpop.permute.xlu0 %1124
    %1127 = vset.pattern.permute.xlu0 1
    %1128 = vperm.xlu0 %1127, %v221
    %v1129 = vpop.permute.xlu0 %1128
    %1131 = vset.pattern.permute.xlu0 1
    %1132 = vperm.xlu0 %1131, %v222
    %v1133 = vpop.permute.xlu0 %1132
    %1135 = vset.pattern.permute.xlu0 1
    %1136 = vperm.xlu0 %1135, %v223
    %v1137 = vpop.permute.xlu0 %1136
    %1139 = vset.pattern.permute.xlu0 1
    %1140 = vperm.xlu0 %1139, %v224
    %v1141 = vpop.permute.xlu0 %1140
    %1143 = vset.pattern.permute.xlu0 1
    %1144 = vperm.xlu0 %1143, %v225
    %v1145 = vpop.permute.xlu0 %1144
    %1147 = vset.pattern.permute.xlu0 1
    %1148 = vperm.xlu0 %1147, %v226
    %v1149 = vpop.permute.xlu0 %1148
    %1151 = vset.pattern.permute.xlu0 1
    %1152 = vperm.xlu0 %1151, %v227
    %v1153 = vpop.permute.xlu0 %1152
    %1155 = vset.pattern.permute.xlu0 1
    %1156 = vperm.xlu0 %1155, %v228
    %v1157 = vpop.permute.xlu0 %1156
    %1159 = vset.pattern.permute.xlu0 1
    %1160 = vperm.xlu0 %1159, %v229
    %v1161 = vpop.permute.xlu0 %1160
    %1163 = vset.pattern.permute.xlu0 1
    %1164 = vperm.xlu0 %1163, %v230
    %v1165 = vpop.permute.xlu0 %1164
    %1167 = vset.pattern.permute.xlu0 1
    %1168 = vperm.xlu0 %1167, %v231
    %v1169 = vpop.permute.xlu0 %1168
    %1171 = vset.pattern.permute.xlu0 1
    %1172 = vperm.xlu0 %1171, %v232
    %v1173 = vpop.permute.xlu0 %1172
    %1175 = vset.pattern.permute.xlu0 1
    %1176 = vperm.xlu0 %1175, %v233
    %v1177 = vpop.permute.xlu0 %1176
    %1179 = vset.pattern.permute.xlu0 1
    %1180 = vperm.xlu0 %1179, %v234
    %v1181 = vpop.permute.xlu0 %1180
    %1183 = vset.pattern.permute.xlu0 1
    %1184 = vperm.xlu0 %1183, %v235
    %v1185 = vpop.permute.xlu0 %1184
    %1187 = vset.pattern.permute.xlu0 1
    %1188 = vperm.xlu0 %1187, %v236
    %v1189 = vpop.permute.xlu0 %1188
    %1191 = vset.pattern.permute.xlu0 1
    %1192 = vperm.xlu0 %1191, %v237
    %v1193 = vpop.permute.xlu0 %1192
    %1195 = vset.pattern.permute.xlu0 1
    %1196 = vperm.xlu0 %1195, %v238
    %v1197 = vpop.permute.xlu0 %1196
    %v1199 = vmul.f32 %v817, %v30
    %v1200 = vmul.f32 %v821, %v30
    %v1201 = vmul.f32 %v825, %v30
    %v1202 = vmul.f32 %v829, %v30
    %v1203 = vmul.f32 %v833, %v30
    %v1204 = vmul.f32 %v837, %v30
    %v1205 = vmul.f32 %v841, %v30
    %v1206 = vmul.f32 %v845, %v30
    %v1207 = vmul.f32 %v849, %v30
    %v1208 = vmul.f32 %v853, %v30
    %v1209 = vmul.f32 %v857, %v30
    %v1210 = vmul.f32 %v861, %v30
    %v1211 = vmul.f32 %v865, %v30
    %v1212 = vmul.f32 %v869, %v30
    %v1213 = vmul.f32 %v873, %v30
    %v1214 = vmul.f32 %v877, %v30
    %v1215 = vmul.f32 %v881, %v30
    %v1216 = vmul.f32 %v885, %v30
    %v1217 = vmul.f32 %v889, %v30
    %v1218 = vmul.f32 %v893, %v30
    %v1219 = vmul.f32 %v897, %v30
    %v1220 = vmul.f32 %v901, %v30
    %v1221 = vmul.f32 %v905, %v30
    %v1222 = vmul.f32 %v909, %v30
    %v1223 = vmul.f32 %v913, %v30
    %v1224 = vmul.f32 %v917, %v30
    %v1225 = vmul.f32 %v921, %v30
    %v1226 = vmul.f32 %v925, %v30
    %v1227 = vmul.f32 %v929, %v30
    %v1228 = vmul.f32 %v933, %v30
    %v1229 = vmul.f32 %v937, %v30
    %v1230 = vmul.f32 %v941, %v30
    %v1231 = vmul.f32 %v945, %v142
    %v1232 = vmul.f32 %v949, %v142
    %v1233 = vmul.f32 %v953, %v142
    %v1234 = vmul.f32 %v957, %v142
    %v1235 = vmul.f32 %v961, %v142
    %v1236 = vmul.f32 %v965, %v142
    %v1237 = vmul.f32 %v969, %v142
    %v1238 = vmul.f32 %v973, %v142
    %v1239 = vmul.f32 %v977, %v142
    %v1240 = vmul.f32 %v981, %v142
    %v1241 = vmul.f32 %v985, %v142
    %v1242 = vmul.f32 %v989, %v142
    %v1243 = vmul.f32 %v993, %v142
    %v1244 = vmul.f32 %v997, %v142
    %v1245 = vmul.f32 %v1001, %v142
    %v1246 = vmul.f32 %v1005, %v142
    %v1247 = vmul.f32 %v1009, %v142
    %v1248 = vmul.f32 %v1013, %v142
    %v1249 = vmul.f32 %v1017, %v142
    %v1250 = vmul.f32 %v1021, %v142
    %v1251 = vmul.f32 %v1025, %v142
    %v1252 = vmul.f32 %v1029, %v142
    %v1253 = vmul.f32 %v1033, %v142
    %v1254 = vmul.f32 %v1037, %v142
    %v1255 = vmul.f32 %v1041, %v142
    %v1256 = vmul.f32 %v1045, %v142
    %v1257 = vmul.f32 %v1049, %v142
    %v1258 = vmul.f32 %v1053, %v142
    %v1259 = vmul.f32 %v1057, %v142
    %v1260 = vmul.f32 %v1061, %v142
    %v1261 = vmul.f32 %v1065, %v142
    %v1262 = vmul.f32 %v1069, %v142
    %v1263 = vmul.f32 %v1073, %v30
    %v1264 = vmul.f32 %v1077, %v30
    %v1265 = vmul.f32 %v1081, %v30
    %v1266 = vmul.f32 %v1085, %v30
    %v1267 = vmul.f32 %v1089, %v30
    %v1268 = vmul.f32 %v1093, %v30
    %v1269 = vmul.f32 %v1097, %v30
    %v1270 = vmul.f32 %v1101, %v30
    %v1271 = vmul.f32 %v1105, %v30
    %v1272 = vmul.f32 %v1109, %v30
    %v1273 = vmul.f32 %v1113, %v30
    %v1274 = vmul.f32 %v1117, %v30
    %v1275 = vmul.f32 %v1121, %v30
    %v1276 = vmul.f32 %v1125, %v30
    %v1277 = vmul.f32 %v1129, %v30
    %v1278 = vmul.f32 %v1133, %v30
    %v1279 = vmul.f32 %v1137, %v30
    %v1280 = vmul.f32 %v1141, %v30
    %v1281 = vmul.f32 %v1145, %v30
    %v1282 = vmul.f32 %v1149, %v30
    %v1283 = vmul.f32 %v1153, %v30
    %v1284 = vmul.f32 %v1157, %v30
    %v1285 = vmul.f32 %v1161, %v30
    %v1286 = vmul.f32 %v1165, %v30
    %v1287 = vmul.f32 %v1169, %v30
    %v1288 = vmul.f32 %v1173, %v30
    %v1289 = vmul.f32 %v1177, %v30
    %v1290 = vmul.f32 %v1181, %v30
    %v1291 = vmul.f32 %v1185, %v30
    %v1292 = vmul.f32 %v1189, %v30
    %v1293 = vmul.f32 %v1193, %v30
    %v1294 = vmul.f32 %v1197, %v30
    %v1295 = vadd.f32 %v719, %v1199
    %v1296 = vadd.f32 %v720, %v1200
    %v1297 = vadd.f32 %v721, %v1201
    %v1298 = vadd.f32 %v722, %v1202
    %v1299 = vadd.f32 %v723, %v1203
    %v1300 = vadd.f32 %v724, %v1204
    %v1301 = vadd.f32 %v725, %v1205
    %v1302 = vadd.f32 %v726, %v1206
    %v1303 = vadd.f32 %v727, %v1207
    %v1304 = vadd.f32 %v728, %v1208
    %v1305 = vadd.f32 %v729, %v1209
    %v1306 = vadd.f32 %v730, %v1210
    %v1307 = vadd.f32 %v731, %v1211
    %v1308 = vadd.f32 %v732, %v1212
    %v1309 = vadd.f32 %v733, %v1213
    %v1310 = vadd.f32 %v734, %v1214
    %v1311 = vadd.f32 %v735, %v1215
    %v1312 = vadd.f32 %v736, %v1216
    %v1313 = vadd.f32 %v737, %v1217
    %v1314 = vadd.f32 %v738, %v1218
    %v1315 = vadd.f32 %v739, %v1219
    %v1316 = vadd.f32 %v740, %v1220
    %v1317 = vadd.f32 %v741, %v1221
    %v1318 = vadd.f32 %v742, %v1222
    %v1319 = vadd.f32 %v743, %v1223
    %v1320 = vadd.f32 %v744, %v1224
    %v1321 = vadd.f32 %v745, %v1225
    %v1322 = vadd.f32 %v746, %v1226
    %v1323 = vadd.f32 %v747, %v1227
    %v1324 = vadd.f32 %v748, %v1228
    %v1325 = vadd.f32 %v749, %v1229
    %v1326 = vadd.f32 %v750, %v1230
    %v1327 = vadd.f32 %v751, %v1231
    %v1328 = vadd.f32 %v752, %v1232
    %v1329 = vadd.f32 %v753, %v1233
    %v1330 = vadd.f32 %v754, %v1234
    %v1331 = vadd.f32 %v755, %v1235
    %v1332 = vadd.f32 %v756, %v1236
    %v1333 = vadd.f32 %v757, %v1237
    %v1334 = vadd.f32 %v758, %v1238
    %v1335 = vadd.f32 %v759, %v1239
    %v1336 = vadd.f32 %v760, %v1240
    %v1337 = vadd.f32 %v761, %v1241
    %v1338 = vadd.f32 %v762, %v1242
    %v1339 = vadd.f32 %v763, %v1243
    %v1340 = vadd.f32 %v764, %v1244
    %v1341 = vadd.f32 %v765, %v1245
    %v1342 = vadd.f32 %v766, %v1246
    %v1343 = vadd.f32 %v767, %v1247
    %v1344 = vadd.f32 %v768, %v1248
    %v1345 = vadd.f32 %v769, %v1249
    %v1346 = vadd.f32 %v770, %v1250
    %v1347 = vadd.f32 %v771, %v1251
    %v1348 = vadd.f32 %v772, %v1252
    %v1349 = vadd.f32 %v773, %v1253
    %v1350 = vadd.f32 %v774, %v1254
    %v1351 = vadd.f32 %v775, %v1255
    %v1352 = vadd.f32 %v776, %v1256
    %v1353 = vadd.f32 %v777, %v1257
    %v1354 = vadd.f32 %v778, %v1258
    %v1355 = vadd.f32 %v779, %v1259
    %v1356 = vadd.f32 %v780, %v1260
    %v1357 = vadd.f32 %v781, %v1261
    %v1358 = vadd.f32 %v782, %v1262
    %v1359 = vadd.f32 %v783, %v1263
    %v1360 = vadd.f32 %v784, %v1264
    %v1361 = vadd.f32 %v785, %v1265
    %v1362 = vadd.f32 %v786, %v1266
    %v1363 = vadd.f32 %v787, %v1267
    %v1364 = vadd.f32 %v788, %v1268
    %v1365 = vadd.f32 %v789, %v1269
    %v1366 = vadd.f32 %v790, %v1270
    %v1367 = vadd.f32 %v791, %v1271
    %v1368 = vadd.f32 %v792, %v1272
    %v1369 = vadd.f32 %v793, %v1273
    %v1370 = vadd.f32 %v794, %v1274
    %v1371 = vadd.f32 %v795, %v1275
    %v1372 = vadd.f32 %v796, %v1276
    %v1373 = vadd.f32 %v797, %v1277
    %v1374 = vadd.f32 %v798, %v1278
    %v1375 = vadd.f32 %v799, %v1279
    %v1376 = vadd.f32 %v800, %v1280
    %v1377 = vadd.f32 %v801, %v1281
    %v1378 = vadd.f32 %v802, %v1282
    %v1379 = vadd.f32 %v803, %v1283
    %v1380 = vadd.f32 %v804, %v1284
    %v1381 = vadd.f32 %v805, %v1285
    %v1382 = vadd.f32 %v806, %v1286
    %v1383 = vadd.f32 %v807, %v1287
    %v1384 = vadd.f32 %v808, %v1288
    %v1385 = vadd.f32 %v809, %v1289
    %v1386 = vadd.f32 %v810, %v1290
    %v1387 = vadd.f32 %v811, %v1291
    %v1388 = vadd.f32 %v812, %v1292
    %v1389 = vadd.f32 %v813, %v1293
    %v1390 = vadd.f32 %v814, %v1294
    %1391 = vset.pattern.permute.xlu0 2
    %1392 = vperm.xlu0 %1391, %v143
    %v1393 = vpop.permute.xlu0 %1392
    %1395 = vset.pattern.permute.xlu0 2
    %1396 = vperm.xlu0 %1395, %v144
    %v1397 = vpop.permute.xlu0 %1396
    %1399 = vset.pattern.permute.xlu0 2
    %1400 = vperm.xlu0 %1399, %v145
    %v1401 = vpop.permute.xlu0 %1400
    %1403 = vset.pattern.permute.xlu0 2
    %1404 = vperm.xlu0 %1403, %v146
    %v1405 = vpop.permute.xlu0 %1404
    %1407 = vset.pattern.permute.xlu0 2
    %1408 = vperm.xlu0 %1407, %v147
    %v1409 = vpop.permute.xlu0 %1408
    %1411 = vset.pattern.permute.xlu0 2
    %1412 = vperm.xlu0 %1411, %v148
    %v1413 = vpop.permute.xlu0 %1412
    %1415 = vset.pattern.permute.xlu0 2
    %1416 = vperm.xlu0 %1415, %v149
    %v1417 = vpop.permute.xlu0 %1416
    %1419 = vset.pattern.permute.xlu0 2
    %1420 = vperm.xlu0 %1419, %v150
    %v1421 = vpop.permute.xlu0 %1420
    %1423 = vset.pattern.permute.xlu0 2
    %1424 = vperm.xlu0 %1423, %v151
    %v1425 = vpop.permute.xlu0 %1424
    %1427 = vset.pattern.permute.xlu0 2
    %1428 = vperm.xlu0 %1427, %v152
    %v1429 = vpop.permute.xlu0 %1428
    %1431 = vset.pattern.permute.xlu0 2
    %1432 = vperm.xlu0 %1431, %v153
    %v1433 = vpop.permute.xlu0 %1432
    %1435 = vset.pattern.permute.xlu0 2
    %1436 = vperm.xlu0 %1435, %v154
    %v1437 = vpop.permute.xlu0 %1436
    %1439 = vset.pattern.permute.xlu0 2
    %1440 = vperm.xlu0 %1439, %v155
    %v1441 = vpop.permute.xlu0 %1440
    %1443 = vset.pattern.permute.xlu0 2
    %1444 = vperm.xlu0 %1443, %v156
    %v1445 = vpop.permute.xlu0 %1444
    %1447 = vset.pattern.permute.xlu0 2
    %1448 = vperm.xlu0 %1447, %v157
    %v1449 = vpop.permute.xlu0 %1448
    %1451 = vset.pattern.permute.xlu0 2
    %1452 = vperm.xlu0 %1451, %v158
    %v1453 = vpop.permute.xlu0 %1452
    %1455 = vset.pattern.permute.xlu0 2
    %1456 = vperm.xlu0 %1455, %v159
    %v1457 = vpop.permute.xlu0 %1456
    %1459 = vset.pattern.permute.xlu0 2
    %1460 = vperm.xlu0 %1459, %v160
    %v1461 = vpop.permute.xlu0 %1460
    %1463 = vset.pattern.permute.xlu0 2
    %1464 = vperm.xlu0 %1463, %v161
    %v1465 = vpop.permute.xlu0 %1464
    %1467 = vset.pattern.permute.xlu0 2
    %1468 = vperm.xlu0 %1467, %v162
    %v1469 = vpop.permute.xlu0 %1468
    %1471 = vset.pattern.permute.xlu0 2
    %1472 = vperm.xlu0 %1471, %v163
    %v1473 = vpop.permute.xlu0 %1472
    %1475 = vset.pattern.permute.xlu0 2
    %1476 = vperm.xlu0 %1475, %v164
    %v1477 = vpop.permute.xlu0 %1476
    %1479 = vset.pattern.permute.xlu0 2
    %1480 = vperm.xlu0 %1479, %v165
    %v1481 = vpop.permute.xlu0 %1480
    %1483 = vset.pattern.permute.xlu0 2
    %1484 = vperm.xlu0 %1483, %v166
    %v1485 = vpop.permute.xlu0 %1484
    %1487 = vset.pattern.permute.xlu0 2
    %1488 = vperm.xlu0 %1487, %v167
    %v1489 = vpop.permute.xlu0 %1488
    %1491 = vset.pattern.permute.xlu0 2
    %1492 = vperm.xlu0 %1491, %v168
    %v1493 = vpop.permute.xlu0 %1492
    %1495 = vset.pattern.permute.xlu0 2
    %1496 = vperm.xlu0 %1495, %v169
    %v1497 = vpop.permute.xlu0 %1496
    %1499 = vset.pattern.permute.xlu0 2
    %1500 = vperm.xlu0 %1499, %v170
    %v1501 = vpop.permute.xlu0 %1500
    %1503 = vset.pattern.permute.xlu0 2
    %1504 = vperm.xlu0 %1503, %v171
    %v1505 = vpop.permute.xlu0 %1504
    %1507 = vset.pattern.permute.xlu0 2
    %1508 = vperm.xlu0 %1507, %v172
    %v1509 = vpop.permute.xlu0 %1508
    %1511 = vset.pattern.permute.xlu0 2
    %1512 = vperm.xlu0 %1511, %v173
    %v1513 = vpop.permute.xlu0 %1512
    %1515 = vset.pattern.permute.xlu0 2
    %1516 = vperm.xlu0 %1515, %v174
    %v1517 = vpop.permute.xlu0 %1516
    %1519 = vset.pattern.permute.xlu0 2
    %1520 = vperm.xlu0 %1519, %v175
    %v1521 = vpop.permute.xlu0 %1520
    %1523 = vset.pattern.permute.xlu0 2
    %1524 = vperm.xlu0 %1523, %v176
    %v1525 = vpop.permute.xlu0 %1524
    %1527 = vset.pattern.permute.xlu0 2
    %1528 = vperm.xlu0 %1527, %v177
    %v1529 = vpop.permute.xlu0 %1528
    %1531 = vset.pattern.permute.xlu0 2
    %1532 = vperm.xlu0 %1531, %v178
    %v1533 = vpop.permute.xlu0 %1532
    %1535 = vset.pattern.permute.xlu0 2
    %1536 = vperm.xlu0 %1535, %v179
    %v1537 = vpop.permute.xlu0 %1536
    %1539 = vset.pattern.permute.xlu0 2
    %1540 = vperm.xlu0 %1539, %v180
    %v1541 = vpop.permute.xlu0 %1540
    %1543 = vset.pattern.permute.xlu0 2
    %1544 = vperm.xlu0 %1543, %v181
    %v1545 = vpop.permute.xlu0 %1544
    %1547 = vset.pattern.permute.xlu0 2
    %1548 = vperm.xlu0 %1547, %v182
    %v1549 = vpop.permute.xlu0 %1548
    %1551 = vset.pattern.permute.xlu0 2
    %1552 = vperm.xlu0 %1551, %v183
    %v1553 = vpop.permute.xlu0 %1552
    %1555 = vset.pattern.permute.xlu0 2
    %1556 = vperm.xlu0 %1555, %v184
    %v1557 = vpop.permute.xlu0 %1556
    %1559 = vset.pattern.permute.xlu0 2
    %1560 = vperm.xlu0 %1559, %v185
    %v1561 = vpop.permute.xlu0 %1560
    %1563 = vset.pattern.permute.xlu0 2
    %1564 = vperm.xlu0 %1563, %v186
    %v1565 = vpop.permute.xlu0 %1564
    %1567 = vset.pattern.permute.xlu0 2
    %1568 = vperm.xlu0 %1567, %v187
    %v1569 = vpop.permute.xlu0 %1568
    %1571 = vset.pattern.permute.xlu0 2
    %1572 = vperm.xlu0 %1571, %v188
    %v1573 = vpop.permute.xlu0 %1572
    %1575 = vset.pattern.permute.xlu0 2
    %1576 = vperm.xlu0 %1575, %v189
    %v1577 = vpop.permute.xlu0 %1576
    %1579 = vset.pattern.permute.xlu0 2
    %1580 = vperm.xlu0 %1579, %v190
    %v1581 = vpop.permute.xlu0 %1580
    %1583 = vset.pattern.permute.xlu0 2
    %1584 = vperm.xlu0 %1583, %v191
    %v1585 = vpop.permute.xlu0 %1584
    %1587 = vset.pattern.permute.xlu0 2
    %1588 = vperm.xlu0 %1587, %v192
    %v1589 = vpop.permute.xlu0 %1588
    %1591 = vset.pattern.permute.xlu0 2
    %1592 = vperm.xlu0 %1591, %v193
    %v1593 = vpop.permute.xlu0 %1592
    %1595 = vset.pattern.permute.xlu0 2
    %1596 = vperm.xlu0 %1595, %v194
    %v1597 = vpop.permute.xlu0 %1596
    %1599 = vset.pattern.permute.xlu0 2
    %1600 = vperm.xlu0 %1599, %v195
    %v1601 = vpop.permute.xlu0 %1600
    %1603 = vset.pattern.permute.xlu0 2
    %1604 = vperm.xlu0 %1603, %v196
    %v1605 = vpop.permute.xlu0 %1604
    %1607 = vset.pattern.permute.xlu0 2
    %1608 = vperm.xlu0 %1607, %v197
    %v1609 = vpop.permute.xlu0 %1608
    %1611 = vset.pattern.permute.xlu0 2
    %1612 = vperm.xlu0 %1611, %v198
    %v1613 = vpop.permute.xlu0 %1612
    %1615 = vset.pattern.permute.xlu0 2
    %1616 = vperm.xlu0 %1615, %v199
    %v1617 = vpop.permute.xlu0 %1616
    %1619 = vset.pattern.permute.xlu0 2
    %1620 = vperm.xlu0 %1619, %v200
    %v1621 = vpop.permute.xlu0 %1620
    %1623 = vset.pattern.permute.xlu0 2
    %1624 = vperm.xlu0 %1623, %v201
    %v1625 = vpop.permute.xlu0 %1624
    %1627 = vset.pattern.permute.xlu0 2
    %1628 = vperm.xlu0 %1627, %v202
    %v1629 = vpop.permute.xlu0 %1628
    %1631 = vset.pattern.permute.xlu0 2
    %1632 = vperm.xlu0 %1631, %v203
    %v1633 = vpop.permute.xlu0 %1632
    %1635 = vset.pattern.permute.xlu0 2
    %1636 = vperm.xlu0 %1635, %v204
    %v1637 = vpop.permute.xlu0 %1636
    %1639 = vset.pattern.permute.xlu0 2
    %1640 = vperm.xlu0 %1639, %v205
    %v1641 = vpop.permute.xlu0 %1640
    %1643 = vset.pattern.permute.xlu0 2
    %1644 = vperm.xlu0 %1643, %v206
    %v1645 = vpop.permute.xlu0 %1644
    %1647 = vset.pattern.permute.xlu0 2
    %1648 = vperm.xlu0 %1647, %v207
    %v1649 = vpop.permute.xlu0 %1648
    %1651 = vset.pattern.permute.xlu0 2
    %1652 = vperm.xlu0 %1651, %v208
    %v1653 = vpop.permute.xlu0 %1652
    %1655 = vset.pattern.permute.xlu0 2
    %1656 = vperm.xlu0 %1655, %v209
    %v1657 = vpop.permute.xlu0 %1656
    %1659 = vset.pattern.permute.xlu0 2
    %1660 = vperm.xlu0 %1659, %v210
    %v1661 = vpop.permute.xlu0 %1660
    %1663 = vset.pattern.permute.xlu0 2
    %1664 = vperm.xlu0 %1663, %v211
    %v1665 = vpop.permute.xlu0 %1664
    %1667 = vset.pattern.permute.xlu0 2
    %1668 = vperm.xlu0 %1667, %v212
    %v1669 = vpop.permute.xlu0 %1668
    %1671 = vset.pattern.permute.xlu0 2
    %1672 = vperm.xlu0 %1671, %v213
    %v1673 = vpop.permute.xlu0 %1672
    %1675 = vset.pattern.permute.xlu0 2
    %1676 = vperm.xlu0 %1675, %v214
    %v1677 = vpop.permute.xlu0 %1676
    %1679 = vset.pattern.permute.xlu0 2
    %1680 = vperm.xlu0 %1679, %v215
    %v1681 = vpop.permute.xlu0 %1680
    %1683 = vset.pattern.permute.xlu0 2
    %1684 = vperm.xlu0 %1683, %v216
    %v1685 = vpop.permute.xlu0 %1684
    %1687 = vset.pattern.permute.xlu0 2
    %1688 = vperm.xlu0 %1687, %v217
    %v1689 = vpop.permute.xlu0 %1688
    %1691 = vset.pattern.permute.xlu0 2
    %1692 = vperm.xlu0 %1691, %v218
    %v1693 = vpop.permute.xlu0 %1692
    %1695 = vset.pattern.permute.xlu0 2
    %1696 = vperm.xlu0 %1695, %v219
    %v1697 = vpop.permute.xlu0 %1696
    %1699 = vset.pattern.permute.xlu0 2
    %1700 = vperm.xlu0 %1699, %v220
    %v1701 = vpop.permute.xlu0 %1700
    %1703 = vset.pattern.permute.xlu0 2
    %1704 = vperm.xlu0 %1703, %v221
    %v1705 = vpop.permute.xlu0 %1704
    %1707 = vset.pattern.permute.xlu0 2
    %1708 = vperm.xlu0 %1707, %v222
    %v1709 = vpop.permute.xlu0 %1708
    %1711 = vset.pattern.permute.xlu0 2
    %1712 = vperm.xlu0 %1711, %v223
    %v1713 = vpop.permute.xlu0 %1712
    %1715 = vset.pattern.permute.xlu0 2
    %1716 = vperm.xlu0 %1715, %v224
    %v1717 = vpop.permute.xlu0 %1716
    %1719 = vset.pattern.permute.xlu0 2
    %1720 = vperm.xlu0 %1719, %v225
    %v1721 = vpop.permute.xlu0 %1720
    %1723 = vset.pattern.permute.xlu0 2
    %1724 = vperm.xlu0 %1723, %v226
    %v1725 = vpop.permute.xlu0 %1724
    %1727 = vset.pattern.permute.xlu0 2
    %1728 = vperm.xlu0 %1727, %v227
    %v1729 = vpop.permute.xlu0 %1728
    %1731 = vset.pattern.permute.xlu0 2
    %1732 = vperm.xlu0 %1731, %v228
    %v1733 = vpop.permute.xlu0 %1732
    %1735 = vset.pattern.permute.xlu0 2
    %1736 = vperm.xlu0 %1735, %v229
    %v1737 = vpop.permute.xlu0 %1736
    %1739 = vset.pattern.permute.xlu0 2
    %1740 = vperm.xlu0 %1739, %v230
    %v1741 = vpop.permute.xlu0 %1740
    %1743 = vset.pattern.permute.xlu0 2
    %1744 = vperm.xlu0 %1743, %v231
    %v1745 = vpop.permute.xlu0 %1744
    %1747 = vset.pattern.permute.xlu0 2
    %1748 = vperm.xlu0 %1747, %v232
    %v1749 = vpop.permute.xlu0 %1748
    %1751 = vset.pattern.permute.xlu0 2
    %1752 = vperm.xlu0 %1751, %v233
    %v1753 = vpop.permute.xlu0 %1752
    %1755 = vset.pattern.permute.xlu0 2
    %1756 = vperm.xlu0 %1755, %v234
    %v1757 = vpop.permute.xlu0 %1756
    %1759 = vset.pattern.permute.xlu0 2
    %1760 = vperm.xlu0 %1759, %v235
    %v1761 = vpop.permute.xlu0 %1760
    %1763 = vset.pattern.permute.xlu0 2
    %1764 = vperm.xlu0 %1763, %v236
    %v1765 = vpop.permute.xlu0 %1764
    %1767 = vset.pattern.permute.xlu0 2
    %1768 = vperm.xlu0 %1767, %v237
    %v1769 = vpop.permute.xlu0 %1768
    %1771 = vset.pattern.permute.xlu0 2
    %1772 = vperm.xlu0 %1771, %v238
    %v1773 = vpop.permute.xlu0 %1772
    %v1775 = vadd.f32 %v1295, %v1393
    %v1776 = vadd.f32 %v1296, %v1397
    %v1777 = vadd.f32 %v1297, %v1401
    %v1778 = vadd.f32 %v1298, %v1405
    %v1779 = vadd.f32 %v1299, %v1409
    %v1780 = vadd.f32 %v1300, %v1413
    %v1781 = vadd.f32 %v1301, %v1417
    %v1782 = vadd.f32 %v1302, %v1421
    %v1783 = vadd.f32 %v1303, %v1425
    %v1784 = vadd.f32 %v1304, %v1429
    %v1785 = vadd.f32 %v1305, %v1433
    %v1786 = vadd.f32 %v1306, %v1437
    %v1787 = vadd.f32 %v1307, %v1441
    %v1788 = vadd.f32 %v1308, %v1445
    %v1789 = vadd.f32 %v1309, %v1449
    %v1790 = vadd.f32 %v1310, %v1453
    %v1791 = vadd.f32 %v1311, %v1457
    %v1792 = vadd.f32 %v1312, %v1461
    %v1793 = vadd.f32 %v1313, %v1465
    %v1794 = vadd.f32 %v1314, %v1469
    %v1795 = vadd.f32 %v1315, %v1473
    %v1796 = vadd.f32 %v1316, %v1477
    %v1797 = vadd.f32 %v1317, %v1481
    %v1798 = vadd.f32 %v1318, %v1485
    %v1799 = vadd.f32 %v1319, %v1489
    %v1800 = vadd.f32 %v1320, %v1493
    %v1801 = vadd.f32 %v1321, %v1497
    %v1802 = vadd.f32 %v1322, %v1501
    %v1803 = vadd.f32 %v1323, %v1505
    %v1804 = vadd.f32 %v1324, %v1509
    %v1805 = vadd.f32 %v1325, %v1513
    %v1806 = vadd.f32 %v1326, %v1517
    %v1807 = vadd.f32 %v1327, %v1521
    %v1808 = vadd.f32 %v1328, %v1525
    %v1809 = vadd.f32 %v1329, %v1529
    %v1810 = vadd.f32 %v1330, %v1533
    %v1811 = vadd.f32 %v1331, %v1537
    %v1812 = vadd.f32 %v1332, %v1541
    %v1813 = vadd.f32 %v1333, %v1545
    %v1814 = vadd.f32 %v1334, %v1549
    %v1815 = vadd.f32 %v1335, %v1553
    %v1816 = vadd.f32 %v1336, %v1557
    %v1817 = vadd.f32 %v1337, %v1561
    %v1818 = vadd.f32 %v1338, %v1565
    %v1819 = vadd.f32 %v1339, %v1569
    %v1820 = vadd.f32 %v1340, %v1573
    %v1821 = vadd.f32 %v1341, %v1577
    %v1822 = vadd.f32 %v1342, %v1581
    %v1823 = vadd.f32 %v1343, %v1585
    %v1824 = vadd.f32 %v1344, %v1589
    %v1825 = vadd.f32 %v1345, %v1593
    %v1826 = vadd.f32 %v1346, %v1597
    %v1827 = vadd.f32 %v1347, %v1601
    %v1828 = vadd.f32 %v1348, %v1605
    %v1829 = vadd.f32 %v1349, %v1609
    %v1830 = vadd.f32 %v1350, %v1613
    %v1831 = vadd.f32 %v1351, %v1617
    %v1832 = vadd.f32 %v1352, %v1621
    %v1833 = vadd.f32 %v1353, %v1625
    %v1834 = vadd.f32 %v1354, %v1629
    %v1835 = vadd.f32 %v1355, %v1633
    %v1836 = vadd.f32 %v1356, %v1637
    %v1837 = vadd.f32 %v1357, %v1641
    %v1838 = vadd.f32 %v1358, %v1645
    %v1839 = vadd.f32 %v1359, %v1649
    %v1840 = vadd.f32 %v1360, %v1653
    %v1841 = vadd.f32 %v1361, %v1657
    %v1842 = vadd.f32 %v1362, %v1661
    %v1843 = vadd.f32 %v1363, %v1665
    %v1844 = vadd.f32 %v1364, %v1669
    %v1845 = vadd.f32 %v1365, %v1673
    %v1846 = vadd.f32 %v1366, %v1677
    %v1847 = vadd.f32 %v1367, %v1681
    %v1848 = vadd.f32 %v1368, %v1685
    %v1849 = vadd.f32 %v1369, %v1689
    %v1850 = vadd.f32 %v1370, %v1693
    %v1851 = vadd.f32 %v1371, %v1697
    %v1852 = vadd.f32 %v1372, %v1701
    %v1853 = vadd.f32 %v1373, %v1705
    %v1854 = vadd.f32 %v1374, %v1709
    %v1855 = vadd.f32 %v1375, %v1713
    %v1856 = vadd.f32 %v1376, %v1717
    %v1857 = vadd.f32 %v1377, %v1721
    %v1858 = vadd.f32 %v1378, %v1725
    %v1859 = vadd.f32 %v1379, %v1729
    %v1860 = vadd.f32 %v1380, %v1733
    %v1861 = vadd.f32 %v1381, %v1737
    %v1862 = vadd.f32 %v1382, %v1741
    %v1863 = vadd.f32 %v1383, %v1745
    %v1864 = vadd.f32 %v1384, %v1749
    %v1865 = vadd.f32 %v1385, %v1753
    %v1866 = vadd.f32 %v1386, %v1757
    %v1867 = vadd.f32 %v1387, %v1761
    %v1868 = vadd.f32 %v1388, %v1765
    %v1869 = vadd.f32 %v1389, %v1769
    %v1870 = vadd.f32 %v1390, %v1773
    %v1871 = vtanh.pop %v1775
    %v1872 = vtanh.pop %v1776
    %v1873 = vtanh.pop %v1777
    %v1874 = vtanh.pop %v1778
    %v1875 = vtanh.pop %v1779
    %v1876 = vtanh.pop %v1780
    %v1877 = vtanh.pop %v1781
    %v1878 = vtanh.pop %v1782
    %v1879 = vtanh.pop %v1783
    %v1880 = vtanh.pop %v1784
    %v1881 = vtanh.pop %v1785
    %v1882 = vtanh.pop %v1786
    %v1883 = vtanh.pop %v1787
    %v1884 = vtanh.pop %v1788
    %v1885 = vtanh.pop %v1789
    %v1886 = vtanh.pop %v1790
    %v1887 = vtanh.pop %v1791
    %v1888 = vtanh.pop %v1792
    %v1889 = vtanh.pop %v1793
    %v1890 = vtanh.pop %v1794
    %v1891 = vtanh.pop %v1795
    %v1892 = vtanh.pop %v1796
    %v1893 = vtanh.pop %v1797
    %v1894 = vtanh.pop %v1798
    %v1895 = vtanh.pop %v1799
    %v1896 = vtanh.pop %v1800
    %v1897 = vtanh.pop %v1801
    %v1898 = vtanh.pop %v1802
    %v1899 = vtanh.pop %v1803
    %v1900 = vtanh.pop %v1804
    %v1901 = vtanh.pop %v1805
    %v1902 = vtanh.pop %v1806
    %v1903 = vtanh.pop %v1807
    %v1904 = vtanh.pop %v1808
    %v1905 = vtanh.pop %v1809
    %v1906 = vtanh.pop %v1810
    %v1907 = vtanh.pop %v1811
    %v1908 = vtanh.pop %v1812
    %v1909 = vtanh.pop %v1813
    %v1910 = vtanh.pop %v1814
    %v1911 = vtanh.pop %v1815
    %v1912 = vtanh.pop %v1816
    %v1913 = vtanh.pop %v1817
    %v1914 = vtanh.pop %v1818
    %v1915 = vtanh.pop %v1819
    %v1916 = vtanh.pop %v1820
    %v1917 = vtanh.pop %v1821
    %v1918 = vtanh.pop %v1822
    %v1919 = vtanh.pop %v1823
    %v1920 = vtanh.pop %v1824
    %v1921 = vtanh.pop %v1825
    %v1922 = vtanh.pop %v1826
    %v1923 = vtanh.pop %v1827
    %v1924 = vtanh.pop %v1828
    %v1925 = vtanh.pop %v1829
    %v1926 = vtanh.pop %v1830
    %v1927 = vtanh.pop %v1831
    %v1928 = vtanh.pop %v1832
    %v1929 = vtanh.pop %v1833
    %v1930 = vtanh.pop %v1834
    %v1931 = vtanh.pop %v1835
    %v1932 = vtanh.pop %v1836
    %v1933 = vtanh.pop %v1837
    %v1934 = vtanh.pop %v1838
    %v1935 = vtanh.pop %v1839
    %v1936 = vtanh.pop %v1840
    %v1937 = vtanh.pop %v1841
    %v1938 = vtanh.pop %v1842
    %v1939 = vtanh.pop %v1843
    %v1940 = vtanh.pop %v1844
    %v1941 = vtanh.pop %v1845
    %v1942 = vtanh.pop %v1846
    %v1943 = vtanh.pop %v1847
    %v1944 = vtanh.pop %v1848
    %v1945 = vtanh.pop %v1849
    %v1946 = vtanh.pop %v1850
    %v1947 = vtanh.pop %v1851
    %v1948 = vtanh.pop %v1852
    %v1949 = vtanh.pop %v1853
    %v1950 = vtanh.pop %v1854
    %v1951 = vtanh.pop %v1855
    %v1952 = vtanh.pop %v1856
    %v1953 = vtanh.pop %v1857
    %v1954 = vtanh.pop %v1858
    %v1955 = vtanh.pop %v1859
    %v1956 = vtanh.pop %v1860
    %v1957 = vtanh.pop %v1861
    %v1958 = vtanh.pop %v1862
    %v1959 = vtanh.pop %v1863
    %v1960 = vtanh.pop %v1864
    %v1961 = vtanh.pop %v1865
    %v1962 = vtanh.pop %v1866
    %v1963 = vtanh.pop %v1867
    %v1964 = vtanh.pop %v1868
    %v1965 = vtanh.pop %v1869
    %v1966 = vtanh.pop %v1870
    %1967 = vset.pattern.permute.xlu0 3
    %1968 = vperm.xlu0 %1967, %v143
    %v1969 = vpop.permute.xlu0 %1968
    %1971 = vset.pattern.permute.xlu0 3
    %1972 = vperm.xlu0 %1971, %v144
    %v1973 = vpop.permute.xlu0 %1972
    %1975 = vset.pattern.permute.xlu0 3
    %1976 = vperm.xlu0 %1975, %v145
    %v1977 = vpop.permute.xlu0 %1976
    %1979 = vset.pattern.permute.xlu0 3
    %1980 = vperm.xlu0 %1979, %v146
    %v1981 = vpop.permute.xlu0 %1980
    %1983 = vset.pattern.permute.xlu0 3
    %1984 = vperm.xlu0 %1983, %v147
    %v1985 = vpop.permute.xlu0 %1984
    %1987 = vset.pattern.permute.xlu0 3
    %1988 = vperm.xlu0 %1987, %v148
    %v1989 = vpop.permute.xlu0 %1988
    %1991 = vset.pattern.permute.xlu0 3
    %1992 = vperm.xlu0 %1991, %v149
    %v1993 = vpop.permute.xlu0 %1992
    %1995 = vset.pattern.permute.xlu0 3
    %1996 = vperm.xlu0 %1995, %v150
    %v1997 = vpop.permute.xlu0 %1996
    %1999 = vset.pattern.permute.xlu0 3
    %2000 = vperm.xlu0 %1999, %v151
    %v2001 = vpop.permute.xlu0 %2000
    %2003 = vset.pattern.permute.xlu0 3
    %2004 = vperm.xlu0 %2003, %v152
    %v2005 = vpop.permute.xlu0 %2004
    %2007 = vset.pattern.permute.xlu0 3
    %2008 = vperm.xlu0 %2007, %v153
    %v2009 = vpop.permute.xlu0 %2008
    %2011 = vset.pattern.permute.xlu0 3
    %2012 = vperm.xlu0 %2011, %v154
    %v2013 = vpop.permute.xlu0 %2012
    %2015 = vset.pattern.permute.xlu0 3
    %2016 = vperm.xlu0 %2015, %v155
    %v2017 = vpop.permute.xlu0 %2016
    %2019 = vset.pattern.permute.xlu0 3
    %2020 = vperm.xlu0 %2019, %v156
    %v2021 = vpop.permute.xlu0 %2020
    %2023 = vset.pattern.permute.xlu0 3
    %2024 = vperm.xlu0 %2023, %v157
    %v2025 = vpop.permute.xlu0 %2024
    %2027 = vset.pattern.permute.xlu0 3
    %2028 = vperm.xlu0 %2027, %v158
    %v2029 = vpop.permute.xlu0 %2028
    %2031 = vset.pattern.permute.xlu0 3
    %2032 = vperm.xlu0 %2031, %v159
    %v2033 = vpop.permute.xlu0 %2032
    %2035 = vset.pattern.permute.xlu0 3
    %2036 = vperm.xlu0 %2035, %v160
    %v2037 = vpop.permute.xlu0 %2036
    %2039 = vset.pattern.permute.xlu0 3
    %2040 = vperm.xlu0 %2039, %v161
    %v2041 = vpop.permute.xlu0 %2040
    %2043 = vset.pattern.permute.xlu0 3
    %2044 = vperm.xlu0 %2043, %v162
    %v2045 = vpop.permute.xlu0 %2044
    %2047 = vset.pattern.permute.xlu0 3
    %2048 = vperm.xlu0 %2047, %v163
    %v2049 = vpop.permute.xlu0 %2048
    %2051 = vset.pattern.permute.xlu0 3
    %2052 = vperm.xlu0 %2051, %v164
    %v2053 = vpop.permute.xlu0 %2052
    %2055 = vset.pattern.permute.xlu0 3
    %2056 = vperm.xlu0 %2055, %v165
    %v2057 = vpop.permute.xlu0 %2056
    %2059 = vset.pattern.permute.xlu0 3
    %2060 = vperm.xlu0 %2059, %v166
    %v2061 = vpop.permute.xlu0 %2060
    %2063 = vset.pattern.permute.xlu0 3
    %2064 = vperm.xlu0 %2063, %v167
    %v2065 = vpop.permute.xlu0 %2064
    %2067 = vset.pattern.permute.xlu0 3
    %2068 = vperm.xlu0 %2067, %v168
    %v2069 = vpop.permute.xlu0 %2068
    %2071 = vset.pattern.permute.xlu0 3
    %2072 = vperm.xlu0 %2071, %v169
    %v2073 = vpop.permute.xlu0 %2072
    %2075 = vset.pattern.permute.xlu0 3
    %2076 = vperm.xlu0 %2075, %v170
    %v2077 = vpop.permute.xlu0 %2076
    %2079 = vset.pattern.permute.xlu0 3
    %2080 = vperm.xlu0 %2079, %v171
    %v2081 = vpop.permute.xlu0 %2080
    %2083 = vset.pattern.permute.xlu0 3
    %2084 = vperm.xlu0 %2083, %v172
    %v2085 = vpop.permute.xlu0 %2084
    %2087 = vset.pattern.permute.xlu0 3
    %2088 = vperm.xlu0 %2087, %v173
    %v2089 = vpop.permute.xlu0 %2088
    %2091 = vset.pattern.permute.xlu0 3
    %2092 = vperm.xlu0 %2091, %v174
    %v2093 = vpop.permute.xlu0 %2092
    %2095 = vset.pattern.permute.xlu0 3
    %2096 = vperm.xlu0 %2095, %v175
    %v2097 = vpop.permute.xlu0 %2096
    %2099 = vset.pattern.permute.xlu0 3
    %2100 = vperm.xlu0 %2099, %v176
    %v2101 = vpop.permute.xlu0 %2100
    %2103 = vset.pattern.permute.xlu0 3
    %2104 = vperm.xlu0 %2103, %v177
    %v2105 = vpop.permute.xlu0 %2104
    %2107 = vset.pattern.permute.xlu0 3
    %2108 = vperm.xlu0 %2107, %v178
    %v2109 = vpop.permute.xlu0 %2108
    %2111 = vset.pattern.permute.xlu0 3
    %2112 = vperm.xlu0 %2111, %v179
    %v2113 = vpop.permute.xlu0 %2112
    %2115 = vset.pattern.permute.xlu0 3
    %2116 = vperm.xlu0 %2115, %v180
    %v2117 = vpop.permute.xlu0 %2116
    %2119 = vset.pattern.permute.xlu0 3
    %2120 = vperm.xlu0 %2119, %v181
    %v2121 = vpop.permute.xlu0 %2120
    %2123 = vset.pattern.permute.xlu0 3
    %2124 = vperm.xlu0 %2123, %v182
    %v2125 = vpop.permute.xlu0 %2124
    %2127 = vset.pattern.permute.xlu0 3
    %2128 = vperm.xlu0 %2127, %v183
    %v2129 = vpop.permute.xlu0 %2128
    %2131 = vset.pattern.permute.xlu0 3
    %2132 = vperm.xlu0 %2131, %v184
    %v2133 = vpop.permute.xlu0 %2132
    %2135 = vset.pattern.permute.xlu0 3
    %2136 = vperm.xlu0 %2135, %v185
    %v2137 = vpop.permute.xlu0 %2136
    %2139 = vset.pattern.permute.xlu0 3
    %2140 = vperm.xlu0 %2139, %v186
    %v2141 = vpop.permute.xlu0 %2140
    %2143 = vset.pattern.permute.xlu0 3
    %2144 = vperm.xlu0 %2143, %v187
    %v2145 = vpop.permute.xlu0 %2144
    %2147 = vset.pattern.permute.xlu0 3
    %2148 = vperm.xlu0 %2147, %v188
    %v2149 = vpop.permute.xlu0 %2148
    %2151 = vset.pattern.permute.xlu0 3
    %2152 = vperm.xlu0 %2151, %v189
    %v2153 = vpop.permute.xlu0 %2152
    %2155 = vset.pattern.permute.xlu0 3
    %2156 = vperm.xlu0 %2155, %v190
    %v2157 = vpop.permute.xlu0 %2156
    %2159 = vset.pattern.permute.xlu0 3
    %2160 = vperm.xlu0 %2159, %v191
    %v2161 = vpop.permute.xlu0 %2160
    %2163 = vset.pattern.permute.xlu0 3
    %2164 = vperm.xlu0 %2163, %v192
    %v2165 = vpop.permute.xlu0 %2164
    %2167 = vset.pattern.permute.xlu0 3
    %2168 = vperm.xlu0 %2167, %v193
    %v2169 = vpop.permute.xlu0 %2168
    %2171 = vset.pattern.permute.xlu0 3
    %2172 = vperm.xlu0 %2171, %v194
    %v2173 = vpop.permute.xlu0 %2172
    %2175 = vset.pattern.permute.xlu0 3
    %2176 = vperm.xlu0 %2175, %v195
    %v2177 = vpop.permute.xlu0 %2176
    %2179 = vset.pattern.permute.xlu0 3
    %2180 = vperm.xlu0 %2179, %v196
    %v2181 = vpop.permute.xlu0 %2180
    %2183 = vset.pattern.permute.xlu0 3
    %2184 = vperm.xlu0 %2183, %v197
    %v2185 = vpop.permute.xlu0 %2184
    %2187 = vset.pattern.permute.xlu0 3
    %2188 = vperm.xlu0 %2187, %v198
    %v2189 = vpop.permute.xlu0 %2188
    %2191 = vset.pattern.permute.xlu0 3
    %2192 = vperm.xlu0 %2191, %v199
    %v2193 = vpop.permute.xlu0 %2192
    %2195 = vset.pattern.permute.xlu0 3
    %2196 = vperm.xlu0 %2195, %v200
    %v2197 = vpop.permute.xlu0 %2196
    %2199 = vset.pattern.permute.xlu0 3
    %2200 = vperm.xlu0 %2199, %v201
    %v2201 = vpop.permute.xlu0 %2200
    %2203 = vset.pattern.permute.xlu0 3
    %2204 = vperm.xlu0 %2203, %v202
    %v2205 = vpop.permute.xlu0 %2204
    %2207 = vset.pattern.permute.xlu0 3
    %2208 = vperm.xlu0 %2207, %v203
    %v2209 = vpop.permute.xlu0 %2208
    %2211 = vset.pattern.permute.xlu0 3
    %2212 = vperm.xlu0 %2211, %v204
    %v2213 = vpop.permute.xlu0 %2212
    %2215 = vset.pattern.permute.xlu0 3
    %2216 = vperm.xlu0 %2215, %v205
    %v2217 = vpop.permute.xlu0 %2216
    %2219 = vset.pattern.permute.xlu0 3
    %2220 = vperm.xlu0 %2219, %v206
    %v2221 = vpop.permute.xlu0 %2220
    %2223 = vset.pattern.permute.xlu0 3
    %2224 = vperm.xlu0 %2223, %v207
    %v2225 = vpop.permute.xlu0 %2224
    %2227 = vset.pattern.permute.xlu0 3
    %2228 = vperm.xlu0 %2227, %v208
    %v2229 = vpop.permute.xlu0 %2228
    %2231 = vset.pattern.permute.xlu0 3
    %2232 = vperm.xlu0 %2231, %v209
    %v2233 = vpop.permute.xlu0 %2232
    %2235 = vset.pattern.permute.xlu0 3
    %2236 = vperm.xlu0 %2235, %v210
    %v2237 = vpop.permute.xlu0 %2236
    %2239 = vset.pattern.permute.xlu0 3
    %2240 = vperm.xlu0 %2239, %v211
    %v2241 = vpop.permute.xlu0 %2240
    %2243 = vset.pattern.permute.xlu0 3
    %2244 = vperm.xlu0 %2243, %v212
    %v2245 = vpop.permute.xlu0 %2244
    %2247 = vset.pattern.permute.xlu0 3
    %2248 = vperm.xlu0 %2247, %v213
    %v2249 = vpop.permute.xlu0 %2248
    %2251 = vset.pattern.permute.xlu0 3
    %2252 = vperm.xlu0 %2251, %v214
    %v2253 = vpop.permute.xlu0 %2252
    %2255 = vset.pattern.permute.xlu0 3
    %2256 = vperm.xlu0 %2255, %v215
    %v2257 = vpop.permute.xlu0 %2256
    %2259 = vset.pattern.permute.xlu0 3
    %2260 = vperm.xlu0 %2259, %v216
    %v2261 = vpop.permute.xlu0 %2260
    %2263 = vset.pattern.permute.xlu0 3
    %2264 = vperm.xlu0 %2263, %v217
    %v2265 = vpop.permute.xlu0 %2264
    %2267 = vset.pattern.permute.xlu0 3
    %2268 = vperm.xlu0 %2267, %v218
    %v2269 = vpop.permute.xlu0 %2268
    %2271 = vset.pattern.permute.xlu0 3
    %2272 = vperm.xlu0 %2271, %v219
    %v2273 = vpop.permute.xlu0 %2272
    %2275 = vset.pattern.permute.xlu0 3
    %2276 = vperm.xlu0 %2275, %v220
    %v2277 = vpop.permute.xlu0 %2276
    %2279 = vset.pattern.permute.xlu0 3
    %2280 = vperm.xlu0 %2279, %v221
    %v2281 = vpop.permute.xlu0 %2280
    %2283 = vset.pattern.permute.xlu0 3
    %2284 = vperm.xlu0 %2283, %v222
    %v2285 = vpop.permute.xlu0 %2284
    %2287 = vset.pattern.permute.xlu0 3
    %2288 = vperm.xlu0 %2287, %v223
    %v2289 = vpop.permute.xlu0 %2288
    %2291 = vset.pattern.permute.xlu0 3
    %2292 = vperm.xlu0 %2291, %v224
    %v2293 = vpop.permute.xlu0 %2292
    %2295 = vset.pattern.permute.xlu0 3
    %2296 = vperm.xlu0 %2295, %v225
    %v2297 = vpop.permute.xlu0 %2296
    %2299 = vset.pattern.permute.xlu0 3
    %2300 = vperm.xlu0 %2299, %v226
    %v2301 = vpop.permute.xlu0 %2300
    %2303 = vset.pattern.permute.xlu0 3
    %2304 = vperm.xlu0 %2303, %v227
    %v2305 = vpop.permute.xlu0 %2304
    %2307 = vset.pattern.permute.xlu0 3
    %2308 = vperm.xlu0 %2307, %v228
    %v2309 = vpop.permute.xlu0 %2308
    %2311 = vset.pattern.permute.xlu0 3
    %2312 = vperm.xlu0 %2311, %v229
    %v2313 = vpop.permute.xlu0 %2312
    %2315 = vset.pattern.permute.xlu0 3
    %2316 = vperm.xlu0 %2315, %v230
    %v2317 = vpop.permute.xlu0 %2316
    %2319 = vset.pattern.permute.xlu0 3
    %2320 = vperm.xlu0 %2319, %v231
    %v2321 = vpop.permute.xlu0 %2320
    %2323 = vset.pattern.permute.xlu0 3
    %2324 = vperm.xlu0 %2323, %v232
    %v2325 = vpop.permute.xlu0 %2324
    %2327 = vset.pattern.permute.xlu0 3
    %2328 = vperm.xlu0 %2327, %v233
    %v2329 = vpop.permute.xlu0 %2328
    %2331 = vset.pattern.permute.xlu0 3
    %2332 = vperm.xlu0 %2331, %v234
    %v2333 = vpop.permute.xlu0 %2332
    %2335 = vset.pattern.permute.xlu0 3
    %2336 = vperm.xlu0 %2335, %v235
    %v2337 = vpop.permute.xlu0 %2336
    %2339 = vset.pattern.permute.xlu0 3
    %2340 = vperm.xlu0 %2339, %v236
    %v2341 = vpop.permute.xlu0 %2340
    %2343 = vset.pattern.permute.xlu0 3
    %2344 = vperm.xlu0 %2343, %v237
    %v2345 = vpop.permute.xlu0 %2344
    %2347 = vset.pattern.permute.xlu0 3
    %2348 = vperm.xlu0 %2347, %v238
    %v2349 = vpop.permute.xlu0 %2348
    %v2351 = vmul.f32 %v1969, %v1871
    %v2352 = vmul.f32 %v1973, %v1872
    %v2353 = vmul.f32 %v1977, %v1873
    %v2354 = vmul.f32 %v1981, %v1874
    %v2355 = vmul.f32 %v1985, %v1875
    %v2356 = vmul.f32 %v1989, %v1876
    %v2357 = vmul.f32 %v1993, %v1877
    %v2358 = vmul.f32 %v1997, %v1878
    %v2359 = vmul.f32 %v2001, %v1879
    %v2360 = vmul.f32 %v2005, %v1880
    %v2361 = vmul.f32 %v2009, %v1881
    %v2362 = vmul.f32 %v2013, %v1882
    %v2363 = vmul.f32 %v2017, %v1883
    %v2364 = vmul.f32 %v2021, %v1884
    %v2365 = vmul.f32 %v2025, %v1885
    %v2366 = vmul.f32 %v2029, %v1886
    %v2367 = vmul.f32 %v2033, %v1887
    %v2368 = vmul.f32 %v2037, %v1888
    %v2369 = vmul.f32 %v2041, %v1889
    %v2370 = vmul.f32 %v2045, %v1890
    %v2371 = vmul.f32 %v2049, %v1891
    %v2372 = vmul.f32 %v2053, %v1892
    %v2373 = vmul.f32 %v2057, %v1893
    %v2374 = vmul.f32 %v2061, %v1894
    %v2375 = vmul.f32 %v2065, %v1895
    %v2376 = vmul.f32 %v2069, %v1896
    %v2377 = vmul.f32 %v2073, %v1897
    %v2378 = vmul.f32 %v2077, %v1898
    %v2379 = vmul.f32 %v2081, %v1899
    %v2380 = vmul.f32 %v2085, %v1900
    %v2381 = vmul.f32 %v2089, %v1901
    %v2382 = vmul.f32 %v2093, %v1902
    %v2383 = vmul.f32 %v2097, %v1903
    %v2384 = vmul.f32 %v2101, %v1904
    %v2385 = vmul.f32 %v2105, %v1905
    %v2386 = vmul.f32 %v2109, %v1906
    %v2387 = vmul.f32 %v2113, %v1907
    %v2388 = vmul.f32 %v2117, %v1908
    %v2389 = vmul.f32 %v2121, %v1909
    %v2390 = vmul.f32 %v2125, %v1910
    %v2391 = vmul.f32 %v2129, %v1911
    %v2392 = vmul.f32 %v2133, %v1912
    %v2393 = vmul.f32 %v2137, %v1913
    %v2394 = vmul.f32 %v2141, %v1914
    %v2395 = vmul.f32 %v2145, %v1915
    %v2396 = vmul.f32 %v2149, %v1916
    %v2397 = vmul.f32 %v2153, %v1917
    %v2398 = vmul.f32 %v2157, %v1918
    %v2399 = vmul.f32 %v2161, %v1919
    %v2400 = vmul.f32 %v2165, %v1920
    %v2401 = vmul.f32 %v2169, %v1921
    %v2402 = vmul.f32 %v2173, %v1922
    %v2403 = vmul.f32 %v2177, %v1923
    %v2404 = vmul.f32 %v2181, %v1924
    %v2405 = vmul.f32 %v2185, %v1925
    %v2406 = vmul.f32 %v2189, %v1926
    %v2407 = vmul.f32 %v2193, %v1927
    %v2408 = vmul.f32 %v2197, %v1928
    %v2409 = vmul.f32 %v2201, %v1929
    %v2410 = vmul.f32 %v2205, %v1930
    %v2411 = vmul.f32 %v2209, %v1931
    %v2412 = vmul.f32 %v2213, %v1932
    %v2413 = vmul.f32 %v2217, %v1933
    %v2414 = vmul.f32 %v2221, %v1934
    %v2415 = vmul.f32 %v2225, %v1935
    %v2416 = vmul.f32 %v2229, %v1936
    %v2417 = vmul.f32 %v2233, %v1937
    %v2418 = vmul.f32 %v2237, %v1938
    %v2419 = vmul.f32 %v2241, %v1939
    %v2420 = vmul.f32 %v2245, %v1940
    %v2421 = vmul.f32 %v2249, %v1941
    %v2422 = vmul.f32 %v2253, %v1942
    %v2423 = vmul.f32 %v2257, %v1943
    %v2424 = vmul.f32 %v2261, %v1944
    %v2425 = vmul.f32 %v2265, %v1945
    %v2426 = vmul.f32 %v2269, %v1946
    %v2427 = vmul.f32 %v2273, %v1947
    %v2428 = vmul.f32 %v2277, %v1948
    %v2429 = vmul.f32 %v2281, %v1949
    %v2430 = vmul.f32 %v2285, %v1950
    %v2431 = vmul.f32 %v2289, %v1951
    %v2432 = vmul.f32 %v2293, %v1952
    %v2433 = vmul.f32 %v2297, %v1953
    %v2434 = vmul.f32 %v2301, %v1954
    %v2435 = vmul.f32 %v2305, %v1955
    %v2436 = vmul.f32 %v2309, %v1956
    %v2437 = vmul.f32 %v2313, %v1957
    %v2438 = vmul.f32 %v2317, %v1958
    %v2439 = vmul.f32 %v2321, %v1959
    %v2440 = vmul.f32 %v2325, %v1960
    %v2441 = vmul.f32 %v2329, %v1961
    %v2442 = vmul.f32 %v2333, %v1962
    %v2443 = vmul.f32 %v2337, %v1963
    %v2444 = vmul.f32 %v2341, %v1964
    %v2445 = vmul.f32 %v2345, %v1965
    %v2446 = vmul.f32 %v2349, %v1966
    %v2447 = vadd.f32 %v2351, %v2352
    %v2448 = vadd.f32 %v2447, %v2353
    %v2449 = vadd.f32 %v2448, %v2354
    %v2450 = vadd.f32 %v2449, %v2355
    %v2451 = vadd.f32 %v2450, %v2356
    %v2452 = vadd.f32 %v2451, %v2357
    %v2453 = vadd.f32 %v2452, %v2358
    %v2454 = vadd.f32 %v2453, %v2359
    %v2455 = vadd.f32 %v2454, %v2360
    %v2456 = vadd.f32 %v2455, %v2361
    %v2457 = vadd.f32 %v2456, %v2362
    %v2458 = vadd.f32 %v2457, %v2363
    %v2459 = vadd.f32 %v2458, %v2364
    %v2460 = vadd.f32 %v2459, %v2365
    %v2461 = vadd.f32 %v2460, %v2366
    %v2462 = vadd.f32 %v2461, %v2367
    %v2463 = vadd.f32 %v2462, %v2368
    %v2464 = vadd.f32 %v2463, %v2369
    %v2465 = vadd.f32 %v2464, %v2370
    %v2466 = vadd.f32 %v2465, %v2371
    %v2467 = vadd.f32 %v2466, %v2372
    %v2468 = vadd.f32 %v2467, %v2373
    %v2469 = vadd.f32 %v2468, %v2374
    %v2470 = vadd.f32 %v2469, %v2375
    %v2471 = vadd.f32 %v2470, %v2376
    %v2472 = vadd.f32 %v2471, %v2377
    %v2473 = vadd.f32 %v2472, %v2378
    %v2474 = vadd.f32 %v2473, %v2379
    %v2475 = vadd.f32 %v2474, %v2380
    %v2476 = vadd.f32 %v2475, %v2381
    %v2477 = vadd.f32 %v2476, %v2382
    %v2478 = vadd.f32 %v2383, %v2384
    %v2479 = vadd.f32 %v2478, %v2385
    %v2480 = vadd.f32 %v2479, %v2386
    %v2481 = vadd.f32 %v2480, %v2387
    %v2482 = vadd.f32 %v2481, %v2388
    %v2483 = vadd.f32 %v2482, %v2389
    %v2484 = vadd.f32 %v2483, %v2390
    %v2485 = vadd.f32 %v2484, %v2391
    %v2486 = vadd.f32 %v2485, %v2392
    %v2487 = vadd.f32 %v2486, %v2393
    %v2488 = vadd.f32 %v2487, %v2394
    %v2489 = vadd.f32 %v2488, %v2395
    %v2490 = vadd.f32 %v2489, %v2396
    %v2491 = vadd.f32 %v2490, %v2397
    %v2492 = vadd.f32 %v2491, %v2398
    %v2493 = vadd.f32 %v2492, %v2399
    %v2494 = vadd.f32 %v2493, %v2400
    %v2495 = vadd.f32 %v2494, %v2401
    %v2496 = vadd.f32 %v2495, %v2402
    %v2497 = vadd.f32 %v2496, %v2403
    %v2498 = vadd.f32 %v2497, %v2404
    %v2499 = vadd.f32 %v2498, %v2405
    %v2500 = vadd.f32 %v2499, %v2406
    %v2501 = vadd.f32 %v2500, %v2407
    %v2502 = vadd.f32 %v2501, %v2408
    %v2503 = vadd.f32 %v2502, %v2409
    %v2504 = vadd.f32 %v2503, %v2410
    %v2505 = vadd.f32 %v2504, %v2411
    %v2506 = vadd.f32 %v2505, %v2412
    %v2507 = vadd.f32 %v2506, %v2413
    %v2508 = vadd.f32 %v2507, %v2414
    %v2509 = vadd.f32 %v2415, %v2416
    %v2510 = vadd.f32 %v2509, %v2417
    %v2511 = vadd.f32 %v2510, %v2418
    %v2512 = vadd.f32 %v2511, %v2419
    %v2513 = vadd.f32 %v2512, %v2420
    %v2514 = vadd.f32 %v2513, %v2421
    %v2515 = vadd.f32 %v2514, %v2422
    %v2516 = vadd.f32 %v2515, %v2423
    %v2517 = vadd.f32 %v2516, %v2424
    %v2518 = vadd.f32 %v2517, %v2425
    %v2519 = vadd.f32 %v2518, %v2426
    %v2520 = vadd.f32 %v2519, %v2427
    %v2521 = vadd.f32 %v2520, %v2428
    %v2522 = vadd.f32 %v2521, %v2429
    %v2523 = vadd.f32 %v2522, %v2430
    %v2524 = vadd.f32 %v2523, %v2431
    %v2525 = vadd.f32 %v2524, %v2432
    %v2526 = vadd.f32 %v2525, %v2433
    %v2527 = vadd.f32 %v2526, %v2434
    %v2528 = vadd.f32 %v2527, %v2435
    %v2529 = vadd.f32 %v2528, %v2436
    %v2530 = vadd.f32 %v2529, %v2437
    %v2531 = vadd.f32 %v2530, %v2438
    %v2532 = vadd.f32 %v2531, %v2439
    %v2533 = vadd.f32 %v2532, %v2440
    %v2534 = vadd.f32 %v2533, %v2441
    %v2535 = vadd.f32 %v2534, %v2442
    %v2536 = vadd.f32 %v2535, %v2443
    %v2537 = vadd.f32 %v2536, %v2444
    %v2538 = vadd.f32 %v2537, %v2445
    %v2539 = vadd.f32 %v2538, %v2446
    %s2540 = sld [smem:[#allocation2 + $0x6]]
    %s2541 = sld [smem:[#allocation2 + $0x7]]
    %v2542 = vstv %s2540
    %v2543 = vadd.f32 %v2477, %v2542
    %v2544 = vsub.f32 %v2508, %v2477
    %v2545 = vstv %s2541
    %v2546 = vadd.f32 %v2539, %v2545
    %s2547 = sld [smem:[#allocation2 + $0x3]]
    %s2548 = sld [smem:[#allocation2 + $0x4]]
    %s2549 = sld [smem:[#allocation2 + $0x5]]
    %v2550 = vstv %s2547
    %v2551 = vmul.f32 %v2550, %v28
    %v2552 = vmul.f32 %v2551, %v28
    %v2553 = vstv %s2548
    %v2554 = vmul.f32 %v2553, %v28
    %v2555 = vmul.f32 %v2554, %v30
    %v2556 = vadd.f32 %v2552, %v2555
    %v2557 = vstv %s2549
    %v2558 = vmul.f32 %v2557, %v30
    %v2559 = vmul.f32 %v2558, %v30
    %v2560 = vadd.f32 %v2556, %v2559
    %v2561 = vmul.f32 %v2550, %v33
    %v2562 = vmul.f32 %v2561, %v33
    %v2563 = vmul.f32 %v2553, %v33
    %v2564 = vmul.f32 %v2563, %v142
    %v2565 = vadd.f32 %v2562, %v2564
    %v2566 = vmul.f32 %v2557, %v142
    %v2567 = vmul.f32 %v2566, %v142
    %v2568 = vadd.f32 %v2565, %v2567
    %s2569 = sld [smem:[#allocation2]]
    %s2570 = sld [smem:[#allocation2 + $0x1]]
    %s2571 = sld [smem:[#allocation2 + $0x2]]
    %v2572 = vand.u32 2147483647, %v31
    %vm2573 = vcmp.le.f32.partialorder %v2572, 0.7853982
    %vm2574 = vcmp.lt.s32.totalorder %v31, 0
    %v2575 = vand.u32 %v31, 2139095040
    %v2576 = vshrl.u32 %v2575, 23
    %v2577 = vsub.s32 %v2576, 127
    %v2578 = vand.u32 2147483647, %v31
    %v2579 = vand.u32 %v2578, 8388607
    %v2580 = vor.u32 %v2579, 8388608
    %v2581 = vsub.s32 0, %v2580
    %v2582 = vadd.s32 %v2577, 1
    %vm2583 = vcmp.gt.s32.totalorder %v2582, 0
    %v2584 = vsel %vm2583, %v2582, 0
    %v2585 = vshrl.u32 %v2584, 5
    %v2586 = vand.u32 %v2584, 31
    %v2587 = vsub.s32 32, %v2586
    %v2588 = vshrl.u32 683565275, %v2587
    %v2589 = vshll.u32 683565275, %v2586
    %v2590 = vshrl.u32 2475754826, %v2587
    %v2591 = vor.u32 %v2589, %v2590
    %v2592 = vshll.u32 2475754826, %v2586
    %v2593 = vshrl.u32 2131351028, %v2587
    %v2594 = vor.u32 %v2592, %v2593
    %v2595 = vshll.u32 2131351028, %v2586
    %v2596 = vshrl.u32 2102212464, %v2587
    %v2597 = vor.u32 %v2595, %v2596
    %v2598 = vshll.u32 2102212464, %v2586
    %v2599 = vshrl.u32 920167782, %v2587
    %v2600 = vor.u32 %v2598, %v2599
    %v2601 = vshll.u32 920167782, %v2586
    %v2602 = vshrl.u32 1326507024, %v2587
    %v2603 = vor.u32 %v2601, %v2602
    %vm2604 = vcmp.lt.s32.totalorder %v2585, 1
    %vm2605 = vcmp.lt.s32.totalorder %v2585, 2
    %vm2606 = vcmp.lt.s32.totalorder %v2585, 3
    %vm2607 = vcmp.lt.s32.totalorder %v2585, 4
    %v2608 = vsel %vm2604, %v2588, %v2591
    %v2609 = vsel %vm2607, %v2597, 2102212464
    %v2610 = vsel %vm2606, %v2594, %v2609
    %v2611 = vsel %vm2605, %v2608, %v2610
    %v2612 = vsel %vm2604, %v2591, %v2594
    %v2613 = vsel %vm2607, %v2600, 920167782
    %v2614 = vsel %vm2606, %v2597, %v2613
    %v2615 = vsel %vm2605, %v2612, %v2614
    %v2616 = vsel %vm2604, %v2594, %v2597
    %v2617 = vsel %vm2607, %v2603, 1326507024
    %v2618 = vsel %vm2606, %v2600, %v2617
    %v2619 = vsel %vm2605, %v2616, %v2618
    %v2620 = vshll.u32 %v2580, 8
    %v2621 = vmul.u32.u64.compose %v2620, %v2619
    %v2622 = vextract.low.u32 %v2621
    %v2623 = vextract.high.u32 %v2621
    %v2624 = vmul.u32.u64.compose %v2620, %v2615
    %v2625 = vextract.low.u32 %v2624
    %v2626 = vextract.high.u32 %v2624
    %v2627 = vmul.u32 %v2620, %v2611
    %v2628 = vadd.s32 %v2623, %v2625
    %vm2629 = vc.u32 %v2623, %v2625
    %v2630 = vadd.s32 %v2626, 1
    %v2631 = vsel %vm2629, %v2630, %v2626
    %v2632 = vadd.s32 %v2627, %v2631
    %v2633 = vadd.s32 %v2632, 536870912
    %v2634 = vshrl.u32 %v2633, 30
    %v2635 = vshll.u32 %v2634, 30
    %v2636 = vsub.s32 %v2632, %v2635
    %vm2637 = vcmp.lt.s32.totalorder %v2636, 0
    %v2638 = vsub.s32 0, %v2636
    %v2639 = vsel %vm2637, %v2638, %v2636
    %v2640 = vclz %v2639
    %v2641 = vsub.s32 %v2640, 2
    %vm2642 = vcmp.gt.s32.totalorder 0, %v2641
    %v2643 = vsel %vm2642, 0, %v2641
    %v2644 = vsub.s32 32, %v2643
    %v2645 = vshll.u32 %v2636, %v2643
    %v2646 = vshrl.u32 %v2628, %v2644
    %v2647 = vor.u32 %v2645, %v2646
    %v2648 = vsub.s32 4294967266, %v2643
    %v2649 = vadd.s32 %v2648, 127
    %v2650 = vshll.u32 %v2649, 23
    %v2651 = vor.u32 4788187, %v2650
    %v2652 = vand.u32 2147483647, %v2651
    %v2654 = vcvt.s32.f32 %v2647
    %v2655 = vmul.f32 %v2654, %v2652
    %v2656 = vxor.u32 %v2655, 2147483648
    %v2657 = vsel %vm2574, %v2656, %v2655
    %v2658 = vsub.s32 4, %v2634
    %v2659 = vsel %vm2574, %v2658, %v2634
    %v2660 = vsel %vm2573, %v31, %v2657
    %v2661 = vsel %vm2573, 0, %v2659
    %v2662 = vcosq.f32.pop %v2660
    %v2663 = vsinq.f32.pop %v2660
    %vm2664 = vweird.f32 %v31
    %v2665 = vand.u32 %v2661, 3
    %vm2666 = vcmp.lt.s32.totalorder %v2665, 2
    %vm2667 = vcmp.eq.s32.totalorder %v2665, 0
    %v2668 = vxor.u32 %v2663, 2147483648
    %v2669 = vsel %vm2667, %v2662, %v2668
    %vm2670 = vcmp.eq.s32.totalorder %v2665, 2
    %v2671 = vxor.u32 %v2662, 2147483648
    %v2672 = vsel %vm2670, %v2671, %v2663
    %v2673 = vsel %vm2666, %v2669, %v2672
    %v2674 = vsel %vm2664, nan, %v2673
    %v2675 = vsub.f32 %v2674, 0.5
    %v2676 = vmul.f32 %v2675, -0.1
    %v2677 = vand.u32 2147483647, %v2676
    %v2678 = vstv %s2571
    %v2679 = vmul.f32 %v2678, %v2677
    %v2680 = vmul.f32 %v2676, %v2676
    %v2681 = vstv %s2570
    %v2682 = vmul.f32 %v2681, %v2680
    %v2683 = vadd.f32 %v2679, %v2682
    %v2684 = vstv %s2569
    %v2685 = vsub.f32 %v2684, %v2683
    %v2686 = vsub.f32 %v2568, %v2560
    %2687 = vst [vmem:[#allocation5] sm:$0xff] %v2544
    %2688 = vst [vmem:[#allocation5 + $0x8] sm:$0xff] %v2543
    %2689 = vst [vmem:[#allocation5 + $0x10] sm:$0xff] %v2546
    %2690 = vst [vmem:[#allocation5 + $0x18] sm:$0xff] %v2560
    %2691 = vst [vmem:[#allocation5 + $0x20] sm:$0xff] %v2686
    %2692 = vst [vmem:[#allocation5 + $0x28] sm:$0xff] %v2685
    %2693 = vst [vmem:[#allocation5 + $0x30] sm:$0xff] %v33
    %2694 = vst [vmem:[#allocation5 + $0x38] sm:$0xff] %v142
    // Predicated region
    $region18: #{tpu_custom_call.1} parent=1 // pred_check
      _
    $region19: #{tpu_custom_call.1} parent=1 // pred_check_branch
      %2696 = sbr.rel (0) target = $region21
    $region20: #{tpu_custom_call.1} parent=1 // pred_region
      %s2698 = ssub.s32 1024, 1024
      %2699 = vsyncadd [#allocation3], %s2698
      %s2700 = sshll.u32 [#allocation5], 4
      %s2701 = int_to_ptr.vmem [resolvable:$true] %s2700
      %2706 = dma.vmem_to_hbm [thread:$0]  %s2701, 1024, %s3, [#allocation3], 128, 128, 8
    $region21: #{tpu_custom_call.1} parent=1 // pred_fallthru
      _
    // Predicated region
    $region22: #{tpu_custom_call.1} parent=1 // pred_check
      _
    $region23: #{tpu_custom_call.1} parent=1 // pred_check_branch
      %2708 = sbr.rel (0) target = $region25
    $region24: #{tpu_custom_call.1} parent=1 // pred_region
      %2709 = dma.done [#allocation3], 1024
    $region25: #{tpu_custom_call.1} parent=1 // pred_fallthru
      _
    %2710 = vsyncpa [#allocation3], 1
    %2711 = vsyncpa [#allocation4], 1

</llo_original>
